<compile_context>
chip_gen: v7x
topology: tpu7x:2x2x1
jax: 0.10.0
libtpu: 0.0.40
codegen_flags: <defaults>
</compile_context>

<pallas_src>
import jax
import jax.numpy as jnp
import numpy as np
from jax.experimental import pallas as pl
from jax.experimental.pallas import tpu as pltpu


# ----------------------------------------------------------------------------
# The single fused kernel.
#   p_ref   : (N, 36, 256)      im2col patches, lane-dense H*W
#   wc_ref  : (32, 36)          stacked [conv_w ; conv_wb]
#   bc_ref  : (32, 1)           conv bias, zeros for contribution rows
#   w1r_ref : (8, 256, 128)     stacked [lin1_w^T | lin1_wb^T], reshaped (c,s,j)
#   b1_ref  : (1, 128)          lin1 bias, zeros in contribution columns
#   w2_ref  : (32, 128)         stacked [lin2_w^T | lin2_wb^T | zero pad]
#   b2_ref  : (1, 128)          lin2 bias, zeros elsewhere
# Outputs:
#   conv_ref  : (N, 32, 256)    rows 0:8 = conv preact (+bias), rows 8:32 = contrib
#   slab1_ref : (N, 128)        cols 0:32 = lin1 preact, 32:128 = lin1 contrib
#   slab2_ref : (N, 128)        cols 0:10 = lin2 preact, 10:40 = lin2 contrib
# ----------------------------------------------------------------------------
def _fused_kernel(p_ref, wc_ref, bc_ref, w1r_ref, b1_ref, w2_ref, b2_ref,
                  conv_ref, slab1_ref, slab2_ref):
    n_batch = p_ref.shape[0]
    cout = w1r_ref.shape[0]          # 8  (module conv out channels)
    hidden = w2_ref.shape[0]         # 32 (module lin1 out features)

    w_conv = wc_ref[...]             # (32, 36)
    b_conv = bc_ref[...]             # (32, 1)
    b1 = b1_ref[...]                 # (1, 128)
    w2 = w2_ref[...]                 # (32, 128)
    b2 = b2_ref[...]                 # (1, 128)

    for i in range(n_batch):         # N=2: unrolled, no grid / pipeline overhead
        # Conv2d(4,8,3,p=1) as matmul over im2col patches; module + batched
        # weights in one MXU op. Bias only on the module rows (rest zero).
        out_i = jnp.dot(w_conv, p_ref[i],
                        preferred_element_type=jnp.float32) + b_conv   # (32, 256)
        conv_ref[i] = out_i

        # ReLU on the module-conv rows only (contributions use pre-ReLU x).
        act_i = jnp.maximum(out_i[:cout, :], 0.0)                      # (8, 256)

        # Flatten + Linear(2048, 32) + contributions: contract over (c, s)
        # against the pre-reshaped (8, 256, 128) stacked weight — no in-kernel
        # relayout of the activation is needed.
        acc = b1                                                        # (1, 128)
        for c in range(cout):
            acc = acc + jnp.dot(act_i[c:c + 1, :], w1r_ref[c],
                                preferred_element_type=jnp.float32)     # (1, 128)
        slab1_ref[i:i + 1, :] = acc

        # ReLU + Linear(32, 10) + contributions (zero-padded to 128 lanes).
        h1 = jnp.maximum(acc[:, :hidden], 0.0)                          # (1, 32)
        slab2_ref[i:i + 1, :] = jnp.dot(
            h1, w2, preferred_element_type=jnp.float32) + b2            # (1, 128)


def fused_forward(patches, wc, bc, w1r, b1, w2, b2):
    N, C9, HW = patches.shape
    CS = wc.shape[0]                 # 32 stacked conv rows
    L1 = b1.shape[1]                 # 128
    L2 = b2.shape[1]                 # 128

    def full(shape):
        return pl.BlockSpec(shape, lambda i, _s=len(shape): (0,) * _s)

    flops = 2 * N * (CS * C9 * HW + w1r.shape[0] * w1r.shape[1] * L1
                     + w2.shape[0] * L2)
    bytes_accessed = 4 * (patches.size + wc.size + bc.size + w1r.size + b1.size
                          + w2.size + b2.size + N * CS * HW + N * L1 + N * L2)

    return pl.pallas_call(
        _fused_kernel,
        out_shape=(
            jax.ShapeDtypeStruct((N, CS, HW), jnp.float32),   # conv slab
            jax.ShapeDtypeStruct((N, L1), jnp.float32),       # lin1 slab
            jax.ShapeDtypeStruct((N, L2), jnp.float32),       # lin2 slab
        ),
        grid=(1,),
        in_specs=[full(patches.shape), full(wc.shape), full(bc.shape),
                  full(w1r.shape), full(b1.shape), full(w2.shape),
                  full(b2.shape)],
        out_specs=(full((N, CS, HW)), full((N, L1)), full((N, L2))),
        compiler_params=pltpu.CompilerParams(
            dimension_semantics=("arbitrary",)),
        cost_estimate=pl.CostEstimate(flops=flops, transcendentals=0,
                                      bytes_accessed=bytes_accessed),
    )(patches, wc, bc, w1r, b1, w2, b2)


# ----------------------------------------------------------------------------
# Host-side glue
# ----------------------------------------------------------------------------
def im2col_3x3_lane_dense(x):
    """x:(N,C,H,W) -> (N, C*9, H*W). Column order (c, kh, kw) matches the
    OIHW weight reshape; trailing (lane) axis is the dense H*W spatial dim."""
    N, C, H, W = x.shape
    xp = jnp.pad(x, ((0, 0), (0, 0), (1, 1), (1, 1)))
    cols = [xp[:, :, i:i + H, j:j + W] for i in range(3) for j in range(3)]
    patches = jnp.stack(cols, axis=2)                  # (N, C, 9, H, W)
    return patches.reshape(N, C * 9, H * W)


def _round_up(x, m):
    return ((x + m - 1) // m) * m


def prepare_inputs(params, weights_batch, wbs):
    """One-time weight stacking / reshape / padding, hoisted out of forward."""
    conv_w = params['conv.weight']                     # (8, 4, 3, 3)
    conv_b = params['conv.bias']
    conv_wb = weights_batch['group0.param0']           # (wbs, 8, 4, 3, 3)
    lin1_w = params['lin1.weight']                     # (32, 2048)
    lin1_b = params['lin1.bias']
    lin1_wb = weights_batch['group0.param2']           # (wbs, 32, 2048)
    lin2_w = params['lin2.weight']                     # (10, 32)
    lin2_b = params['lin2.bias']
    lin2_wb = weights_batch['group0.param4']           # (wbs, 10, 32)

    cout = conv_w.shape[0]
    hidden, kin = lin1_w.shape                         # 32, 2048
    nclass = lin2_w.shape[0]
    hw = kin // cout                                   # 256

    # Conv: stack module rows on top of batched rows; bias zero on contrib rows.
    wc = jnp.concatenate([conv_w.reshape(cout, -1),
                          conv_wb.reshape(wbs * cout, -1)], axis=0)      # (32, 36)
    bc = jnp.concatenate([conv_b.reshape(cout, 1),
                          jnp.zeros((wbs * cout, 1), jnp.float32)], axis=0)

    # Lin1: [w1^T | wb1^T], pad to a 128-lane multiple, reshape to (cout, hw, L1).
    w1_st = jnp.concatenate([lin1_w.T,
                             lin1_wb.reshape(wbs * hidden, kin).T], axis=1)
    L1 = _round_up(max(128, w1_st.shape[1]), 128)                        # 128
    w1_st = jnp.pad(w1_st, ((0, 0), (0, L1 - w1_st.shape[1])))
    w1r = w1_st.reshape(cout, hw, L1)                                    # (8,256,128)
    b1 = jnp.pad(lin1_b.reshape(1, -1), ((0, 0), (0, L1 - hidden)))      # (1, 128)

    # Lin2: [w2^T | wb2^T | 0] padded to 128 lanes for unmasked stores.
    w2_st = jnp.concatenate([lin2_w.T,
                             lin2_wb.reshape(wbs * nclass, hidden).T], axis=1)
    L2 = _round_up(max(128, w2_st.shape[1]), 128)                        # 128
    w2 = jnp.pad(w2_st, ((0, 0), (0, L2 - w2_st.shape[1])))              # (32, 128)
    b2 = jnp.pad(lin2_b.reshape(1, -1), ((0, 0), (0, L2 - nclass)))      # (1, 128)

    return {'wc': wc, 'bc': bc, 'w1r': w1r, 'b1': b1, 'w2': w2, 'b2': b2}


# ----------------------------------------------------------------------------
# SequentialWrapper.forward
# ----------------------------------------------------------------------------
def sequential_wrapper_forward(x, prep, wbs, cout, hidden, nclass):
    N, C, H, W = x.shape

    # im2col prologue (host/XLA); the rest of the forward is one kernel.
    patches = im2col_3x3_lane_dense(x)                                   # (N, 36, 256)
    conv_slab, slab1, slab2 = fused_forward(
        patches, prep['wc'], prep['bc'], prep['w1r'], prep['b1'],
        prep['w2'], prep['b2'])

    # module 0/1: Conv2d + ReLU (ReLU fused in-kernel)
    pre_conv = conv_slab[:, :cout, :].reshape(N, cout, H, W)
    ctr_conv = conv_slab[:, cout:, :].reshape(N, wbs, cout, H, W)
    # module 2: Flatten happened inside the kernel
    # module 3/4: Linear(2048,32) + ReLU
    pre1 = slab1[:, :hidden]
    c1 = slab1[:, hidden:hidden * (1 + wbs)].reshape(N, wbs, hidden)
    # module 5: Linear(32,10)
    pre2 = slab2[:, :nclass]
    c2 = slab2[:, nclass:nclass * (1 + wbs)].reshape(N, wbs, nclass)

    contributions = [ctr_conv, c1, c2]
    preactivations = [pre_conv, pre1, pre2]
    return pre2, contributions, preactivations


# ----------------------------------------------------------------------------
# Pure-JAX reference (mirrors the PyTorch forward exactly) for verification
# ----------------------------------------------------------------------------
def _ref_conv(x, w, b=None):
    y = jax.lax.conv_general_dilated(
        x, w, window_strides=(1, 1), padding=((1, 1), (1, 1)),
        dimension_numbers=('NCHW', 'OIHW', 'NCHW'))
    if b is not None:
        y = y + b[None, :, None, None]
    return y


def reference_forward(x, params, weights_batch, wbs):
    contributions, preacts = [], []
    w, b = params['conv.weight'], params['conv.bias']
    wb = weights_batch['group0.param0']
    c = _ref_conv(x, wb.reshape(-1, *wb.shape[2:]))
    contributions.append(c.reshape(c.shape[0], wbs, -1, *c.shape[2:]))
    x = _ref_conv(x, w, b)
    preacts.append(x)
    x = jnp.maximum(x, 0.0)
    x = x.reshape(x.shape[0], -1)

    w, b = params['lin1.weight'], params['lin1.bias']
    wb = weights_batch['group0.param2']
    c = x @ wb.reshape(-1, wb.shape[-1]).T
    contributions.append(c.reshape(x.shape[0], wbs, -1))
    x = x @ w.T + b
    preacts.append(x)
    x = jnp.maximum(x, 0.0)

    w, b = params['lin2.weight'], params['lin2.bias']
    wb = weights_batch['group0.param4']
    c = x @ wb.reshape(-1, wb.shape[-1]).T
    contributions.append(c.reshape(x.shape[0], wbs, -1))
    x = x @ w.T + b
    preacts.append(x)
    return x, contributions, preacts


# TODO(synk): the WeirdLinear / GINConv / torchvision Bottleneck branches of the
# original forward are module types not present in this synthetic Sequential and
# are not instantiated here.

if __name__ == "__main__":
    batch, cin, hw = 2, 4, 16
    cout, hidden, nclass = 8, 32, 10
    wbs = 3

    key = jax.random.PRNGKey(0)
    ks = jax.random.split(key, 10)
    params = {
        'conv.weight': 0.05 * jax.random.normal(ks[0], (cout, cin, 3, 3), jnp.float32),
        'conv.bias':   0.05 * jax.random.normal(ks[1], (cout,), jnp.float32),
        'lin1.weight': 0.05 * jax.random.normal(ks[2], (hidden, cout * hw * hw), jnp.float32),
        'lin1.bias':   0.05 * jax.random.normal(ks[3], (hidden,), jnp.float32),
        'lin2.weight': 0.05 * jax.random.normal(ks[4], (nclass, hidden), jnp.float32),
        'lin2.bias':   0.05 * jax.random.normal(ks[5], (nclass,), jnp.float32),
    }
    weights_batch = {
        'group0.param0': 0.05 * jax.random.normal(ks[6], (wbs, cout, cin, 3, 3), jnp.float32),
        'group0.param2': 0.05 * jax.random.normal(ks[7], (wbs, hidden, cout * hw * hw), jnp.float32),
        'group0.param4': 0.05 * jax.random.normal(ks[8], (wbs, nclass, hidden), jnp.float32),
    }
    x = jax.random.normal(ks[9], (batch, cin, hw, hw), jnp.float32)

    # One-time weight stacking / padding / reshape (hoisted out of the forward).
    prep = prepare_inputs(params, weights_batch, wbs)

    fwd = jax.jit(sequential_wrapper_forward, static_argnums=(2, 3, 4, 5))
    out, contribs, preacts = fwd(x, prep, wbs, cout, hidden, nclass)
    out = jax.block_until_ready(out)
    contribs = jax.block_until_ready(contribs)
    preacts = jax.block_until_ready(preacts)

    ref_out, ref_contribs, ref_preacts = reference_forward(x, params, weights_batch, wbs)

    np.testing.assert_allclose(np.asarray(out), np.asarray(ref_out), rtol=1e-3, atol=1e-3)
    for a, b in zip(contribs, ref_contribs):
        np.testing.assert_allclose(np.asarray(a), np.asarray(b), rtol=1e-3, atol=1e-3)
    for a, b in zip(preacts, ref_preacts):
        np.testing.assert_allclose(np.asarray(a), np.asarray(b), rtol=1e-3, atol=1e-3)

    assert out.shape == (batch, nclass)
    assert contribs[0].shape == (batch, wbs, cout, hw, hw)
    assert contribs[1].shape == (batch, wbs, hidden)
    assert contribs[2].shape == (batch, wbs, nclass)

    print("KERNEL_OK")
</pallas_src>

<mosaic_0001>
module attributes {stable_mosaic.version = 11 : i64} {
  func.func @_fused_kernel(%arg0: i32, %arg1: memref<2x36x256xf32, #tpu.memory_space<vmem>>, %arg2: memref<32x36xf32, #tpu.memory_space<vmem>>, %arg3: memref<32x1xf32, #tpu.memory_space<vmem>>, %arg4: memref<8x256x128xf32, #tpu.memory_space<vmem>>, %arg5: memref<1x128xf32, #tpu.memory_space<vmem>>, %arg6: memref<32x128xf32, #tpu.memory_space<vmem>>, %arg7: memref<1x128xf32, #tpu.memory_space<vmem>>, %arg8: memref<2x32x256xf32, #tpu.memory_space<vmem>>, %arg9: memref<2x128xf32, #tpu.memory_space<vmem>>, %arg10: memref<2x128xf32, #tpu.memory_space<vmem>>) attributes {dimension_semantics = [#tpu.dimension_semantics<arbitrary>], iteration_bounds = array<i64: 1>, scalar_prefetch = 0 : i64, scratch_operands = 0 : i64, tpu.core_type = #tpu.core_type<tc>, window_params = [{pipeline_mode = #tpu.pipeline_mode<synchronous>, transform_indices = @transform_0, window_bounds = array<i64: 2, 36, 256>}, {pipeline_mode = #tpu.pipeline_mode<synchronous>, transform_indices = @transform_1, window_bounds = array<i64: 32, 36>}, {pipeline_mode = #tpu.pipeline_mode<synchronous>, transform_indices = @transform_2, window_bounds = array<i64: 32, 1>}, {pipeline_mode = #tpu.pipeline_mode<synchronous>, transform_indices = @transform_3, window_bounds = array<i64: 8, 256, 128>}, {pipeline_mode = #tpu.pipeline_mode<synchronous>, transform_indices = @transform_4, window_bounds = array<i64: 1, 128>}, {pipeline_mode = #tpu.pipeline_mode<synchronous>, transform_indices = @transform_5, window_bounds = array<i64: 32, 128>}, {pipeline_mode = #tpu.pipeline_mode<synchronous>, transform_indices = @transform_6, window_bounds = array<i64: 1, 128>}, {pipeline_mode = #tpu.pipeline_mode<synchronous>, transform_indices = @transform_7, window_bounds = array<i64: 2, 32, 256>}, {pipeline_mode = #tpu.pipeline_mode<synchronous>, transform_indices = @transform_8, window_bounds = array<i64: 2, 128>}, {pipeline_mode = #tpu.pipeline_mode<synchronous>, transform_indices = @transform_9, window_bounds = array<i64: 2, 128>}]} {
    %c0 = arith.constant 0 : index
    %c0_0 = arith.constant 0 : index
    %0 = vector.load %arg2[%c0, %c0_0] : memref<32x36xf32, #tpu.memory_space<vmem>>, vector<32x36xf32>
    %c0_1 = arith.constant 0 : index
    %c0_2 = arith.constant 0 : index
    %1 = vector.load %arg3[%c0_1, %c0_2] : memref<32x1xf32, #tpu.memory_space<vmem>>, vector<32x1xf32>
    %c0_3 = arith.constant 0 : index
    %c0_4 = arith.constant 0 : index
    %2 = vector.load %arg5[%c0_3, %c0_4] : memref<1x128xf32, #tpu.memory_space<vmem>>, vector<1x128xf32>
    %c0_5 = arith.constant 0 : index
    %c0_6 = arith.constant 0 : index
    %3 = vector.load %arg6[%c0_5, %c0_6] : memref<32x128xf32, #tpu.memory_space<vmem>>, vector<32x128xf32>
    %c0_7 = arith.constant 0 : index
    %c0_8 = arith.constant 0 : index
    %4 = vector.load %arg7[%c0_7, %c0_8] : memref<1x128xf32, #tpu.memory_space<vmem>>, vector<1x128xf32>
    %c0_9 = arith.constant 0 : index
    %c0_10 = arith.constant 0 : index
    %c0_11 = arith.constant 0 : index
    %5 = vector.load %arg1[%c0_9, %c0_10, %c0_11] : memref<2x36x256xf32, #tpu.memory_space<vmem>>, vector<1x36x256xf32>
    %6 = vector.shape_cast %5 : vector<1x36x256xf32> to vector<36x256xf32>
    %cst = arith.constant dense<0.000000e+00> : vector<32x256xf32>
    %7 = tpu.matmul %0, %6, %cst {dimension_numbers = #tpu.dot_dimension_numbers<[1], [0], [0], [1], [0, 0, 1, 1], [], []>} : vector<32x36xf32>, vector<36x256xf32>, vector<32x256xf32> -> vector<32x256xf32>
    %8 = vector.broadcast %1 : vector<32x1xf32> to vector<32x256xf32>
    %9 = arith.addf %7, %8 : vector<32x256xf32>
    %c0_12 = arith.constant 0 : index
    %c0_13 = arith.constant 0 : index
    %c0_14 = arith.constant 0 : index
    %10 = vector.load %arg8[%c0_12, %c0_13, %c0_14] : memref<2x32x256xf32, #tpu.memory_space<vmem>>, vector<1x32x256xf32>
    %11 = vector.shape_cast %10 : vector<1x32x256xf32> to vector<32x256xf32>
    %12 = vector.shape_cast %9 : vector<32x256xf32> to vector<1x32x256xf32>
    tpu.vector_store %arg8[%c0_12, %c0_13, %c0_14], %12 {strides = array<i32>} : memref<2x32x256xf32, #tpu.memory_space<vmem>>, vector<1x32x256xf32>,
    %13 = vector.extract_strided_slice %9 {offsets = [0, 0], sizes = [8, 256], strides = [1, 1]} : vector<32x256xf32> to vector<8x256xf32>
    %cst_15 = arith.constant 0.000000e+00 : f32
    %14 = vector.broadcast %cst_15 : f32 to vector<8x256xf32>
    %15 = arith.maximumf %13, %14 : vector<8x256xf32>
    %16 = vector.extract_strided_slice %15 {offsets = [0, 0], sizes = [1, 256], strides = [1, 1]} : vector<8x256xf32> to vector<1x256xf32>
    %c0_16 = arith.constant 0 : index
    %c0_17 = arith.constant 0 : index
    %c0_18 = arith.constant 0 : index
    %17 = vector.load %arg4[%c0_16, %c0_17, %c0_18] : memref<8x256x128xf32, #tpu.memory_space<vmem>>, vector<1x256x128xf32>
    %18 = vector.shape_cast %17 : vector<1x256x128xf32> to vector<256x128xf32>
    %cst_19 = arith.constant dense<0.000000e+00> : vector<1x128xf32>
    %19 = tpu.matmul %16, %18, %cst_19 {dimension_numbers = #tpu.dot_dimension_numbers<[1], [0], [0], [1], [0, 0, 1, 1], [], []>} : vector<1x256xf32>, vector<256x128xf32>, vector<1x128xf32> -> vector<1x128xf32>
    %20 = arith.addf %2, %19 : vector<1x128xf32>
    %21 = vector.extract_strided_slice %15 {offsets = [1, 0], sizes = [1, 256], strides = [1, 1]} : vector<8x256xf32> to vector<1x256xf32>
    %c1 = arith.constant 1 : index
    %c0_20 = arith.constant 0 : index
    %c0_21 = arith.constant 0 : index
    %22 = vector.load %arg4[%c1, %c0_20, %c0_21] : memref<8x256x128xf32, #tpu.memory_space<vmem>>, vector<1x256x128xf32>
    %23 = vector.shape_cast %22 : vector<1x256x128xf32> to vector<256x128xf32>
    %cst_22 = arith.constant dense<0.000000e+00> : vector<1x128xf32>
    %24 = tpu.matmul %21, %23, %cst_22 {dimension_numbers = #tpu.dot_dimension_numbers<[1], [0], [0], [1], [0, 0, 1, 1], [], []>} : vector<1x256xf32>, vector<256x128xf32>, vector<1x128xf32> -> vector<1x128xf32>
    %25 = arith.addf %20, %24 : vector<1x128xf32>
    %26 = vector.extract_strided_slice %15 {offsets = [2, 0], sizes = [1, 256], strides = [1, 1]} : vector<8x256xf32> to vector<1x256xf32>
    %c2 = arith.constant 2 : index
    %c0_23 = arith.constant 0 : index
    %c0_24 = arith.constant 0 : index
    %27 = vector.load %arg4[%c2, %c0_23, %c0_24] : memref<8x256x128xf32, #tpu.memory_space<vmem>>, vector<1x256x128xf32>
    %28 = vector.shape_cast %27 : vector<1x256x128xf32> to vector<256x128xf32>
    %cst_25 = arith.constant dense<0.000000e+00> : vector<1x128xf32>
    %29 = tpu.matmul %26, %28, %cst_25 {dimension_numbers = #tpu.dot_dimension_numbers<[1], [0], [0], [1], [0, 0, 1, 1], [], []>} : vector<1x256xf32>, vector<256x128xf32>, vector<1x128xf32> -> vector<1x128xf32>
    %30 = arith.addf %25, %29 : vector<1x128xf32>
    %31 = vector.extract_strided_slice %15 {offsets = [3, 0], sizes = [1, 256], strides = [1, 1]} : vector<8x256xf32> to vector<1x256xf32>
    %c3 = arith.constant 3 : index
    %c0_26 = arith.constant 0 : index
    %c0_27 = arith.constant 0 : index
    %32 = vector.load %arg4[%c3, %c0_26, %c0_27] : memref<8x256x128xf32, #tpu.memory_space<vmem>>, vector<1x256x128xf32>
    %33 = vector.shape_cast %32 : vector<1x256x128xf32> to vector<256x128xf32>
    %cst_28 = arith.constant dense<0.000000e+00> : vector<1x128xf32>
    %34 = tpu.matmul %31, %33, %cst_28 {dimension_numbers = #tpu.dot_dimension_numbers<[1], [0], [0], [1], [0, 0, 1, 1], [], []>} : vector<1x256xf32>, vector<256x128xf32>, vector<1x128xf32> -> vector<1x128xf32>
    %35 = arith.addf %30, %34 : vector<1x128xf32>
    %36 = vector.extract_strided_slice %15 {offsets = [4, 0], sizes = [1, 256], strides = [1, 1]} : vector<8x256xf32> to vector<1x256xf32>
    %c4 = arith.constant 4 : index
    %c0_29 = arith.constant 0 : index
    %c0_30 = arith.constant 0 : index
    %37 = vector.load %arg4[%c4, %c0_29, %c0_30] : memref<8x256x128xf32, #tpu.memory_space<vmem>>, vector<1x256x128xf32>
    %38 = vector.shape_cast %37 : vector<1x256x128xf32> to vector<256x128xf32>
    %cst_31 = arith.constant dense<0.000000e+00> : vector<1x128xf32>
    %39 = tpu.matmul %36, %38, %cst_31 {dimension_numbers = #tpu.dot_dimension_numbers<[1], [0], [0], [1], [0, 0, 1, 1], [], []>} : vector<1x256xf32>, vector<256x128xf32>, vector<1x128xf32> -> vector<1x128xf32>
    %40 = arith.addf %35, %39 : vector<1x128xf32>
    %41 = vector.extract_strided_slice %15 {offsets = [5, 0], sizes = [1, 256], strides = [1, 1]} : vector<8x256xf32> to vector<1x256xf32>
    %c5 = arith.constant 5 : index
    %c0_32 = arith.constant 0 : index
    %c0_33 = arith.constant 0 : index
    %42 = vector.load %arg4[%c5, %c0_32, %c0_33] : memref<8x256x128xf32, #tpu.memory_space<vmem>>, vector<1x256x128xf32>
    %43 = vector.shape_cast %42 : vector<1x256x128xf32> to vector<256x128xf32>
    %cst_34 = arith.constant dense<0.000000e+00> : vector<1x128xf32>
    %44 = tpu.matmul %41, %43, %cst_34 {dimension_numbers = #tpu.dot_dimension_numbers<[1], [0], [0], [1], [0, 0, 1, 1], [], []>} : vector<1x256xf32>, vector<256x128xf32>, vector<1x128xf32> -> vector<1x128xf32>
    %45 = arith.addf %40, %44 : vector<1x128xf32>
    %46 = vector.extract_strided_slice %15 {offsets = [6, 0], sizes = [1, 256], strides = [1, 1]} : vector<8x256xf32> to vector<1x256xf32>
    %c6 = arith.constant 6 : index
    %c0_35 = arith.constant 0 : index
    %c0_36 = arith.constant 0 : index
    %47 = vector.load %arg4[%c6, %c0_35, %c0_36] : memref<8x256x128xf32, #tpu.memory_space<vmem>>, vector<1x256x128xf32>
    %48 = vector.shape_cast %47 : vector<1x256x128xf32> to vector<256x128xf32>
    %cst_37 = arith.constant dense<0.000000e+00> : vector<1x128xf32>
    %49 = tpu.matmul %46, %48, %cst_37 {dimension_numbers = #tpu.dot_dimension_numbers<[1], [0], [0], [1], [0, 0, 1, 1], [], []>} : vector<1x256xf32>, vector<256x128xf32>, vector<1x128xf32> -> vector<1x128xf32>
    %50 = arith.addf %45, %49 : vector<1x128xf32>
    %51 = vector.extract_strided_slice %15 {offsets = [7, 0], sizes = [1, 256], strides = [1, 1]} : vector<8x256xf32> to vector<1x256xf32>
    %c7 = arith.constant 7 : index
    %c0_38 = arith.constant 0 : index
    %c0_39 = arith.constant 0 : index
    %52 = vector.load %arg4[%c7, %c0_38, %c0_39] : memref<8x256x128xf32, #tpu.memory_space<vmem>>, vector<1x256x128xf32>
    %53 = vector.shape_cast %52 : vector<1x256x128xf32> to vector<256x128xf32>
    %cst_40 = arith.constant dense<0.000000e+00> : vector<1x128xf32>
    %54 = tpu.matmul %51, %53, %cst_40 {dimension_numbers = #tpu.dot_dimension_numbers<[1], [0], [0], [1], [0, 0, 1, 1], [], []>} : vector<1x256xf32>, vector<256x128xf32>, vector<1x128xf32> -> vector<1x128xf32>
    %55 = arith.addf %50, %54 : vector<1x128xf32>
    %c0_41 = arith.constant 0 : index
    %c0_42 = arith.constant 0 : index
    %56 = vector.load %arg9[%c0_41, %c0_42] : memref<2x128xf32, #tpu.memory_space<vmem>>, vector<1x128xf32>
    tpu.vector_store %arg9[%c0_41, %c0_42], %55 {strides = array<i32>} : memref<2x128xf32, #tpu.memory_space<vmem>>, vector<1x128xf32>,
    %57 = vector.extract_strided_slice %55 {offsets = [0, 0], sizes = [1, 32], strides = [1, 1]} : vector<1x128xf32> to vector<1x32xf32>
    %cst_43 = arith.constant 0.000000e+00 : f32
    %58 = vector.broadcast %cst_43 : f32 to vector<1x32xf32>
    %59 = arith.maximumf %57, %58 : vector<1x32xf32>
    %cst_44 = arith.constant dense<0.000000e+00> : vector<1x128xf32>
    %60 = tpu.matmul %59, %3, %cst_44 {dimension_numbers = #tpu.dot_dimension_numbers<[1], [0], [0], [1], [0, 0, 1, 1], [], []>} : vector<1x32xf32>, vector<32x128xf32>, vector<1x128xf32> -> vector<1x128xf32>
    %61 = arith.addf %60, %4 : vector<1x128xf32>
    %c0_45 = arith.constant 0 : index
    %c0_46 = arith.constant 0 : index
    %62 = vector.load %arg10[%c0_45, %c0_46] : memref<2x128xf32, #tpu.memory_space<vmem>>, vector<1x128xf32>
    tpu.vector_store %arg10[%c0_45, %c0_46], %61 {strides = array<i32>} : memref<2x128xf32, #tpu.memory_space<vmem>>, vector<1x128xf32>,
    %c1_47 = arith.constant 1 : index
    %c0_48 = arith.constant 0 : index
    %c0_49 = arith.constant 0 : index
    %63 = vector.load %arg1[%c1_47, %c0_48, %c0_49] : memref<2x36x256xf32, #tpu.memory_space<vmem>>, vector<1x36x256xf32>
    %64 = vector.shape_cast %63 : vector<1x36x256xf32> to vector<36x256xf32>
    %cst_50 = arith.constant dense<0.000000e+00> : vector<32x256xf32>
    %65 = tpu.matmul %0, %64, %cst_50 {dimension_numbers = #tpu.dot_dimension_numbers<[1], [0], [0], [1], [0, 0, 1, 1], [], []>} : vector<32x36xf32>, vector<36x256xf32>, vector<32x256xf32> -> vector<32x256xf32>
    %66 = vector.broadcast %1 : vector<32x1xf32> to vector<32x256xf32>
    %67 = arith.addf %65, %66 : vector<32x256xf32>
    %c1_51 = arith.constant 1 : index
    %c0_52 = arith.constant 0 : index
    %c0_53 = arith.constant 0 : index
    %68 = vector.load %arg8[%c1_51, %c0_52, %c0_53] : memref<2x32x256xf32, #tpu.memory_space<vmem>>, vector<1x32x256xf32>
    %69 = vector.shape_cast %68 : vector<1x32x256xf32> to vector<32x256xf32>
    %70 = vector.shape_cast %67 : vector<32x256xf32> to vector<1x32x256xf32>
    tpu.vector_store %arg8[%c1_51, %c0_52, %c0_53], %70 {strides = array<i32>} : memref<2x32x256xf32, #tpu.memory_space<vmem>>, vector<1x32x256xf32>,
    %71 = vector.extract_strided_slice %67 {offsets = [0, 0], sizes = [8, 256], strides = [1, 1]} : vector<32x256xf32> to vector<8x256xf32>
    %cst_54 = arith.constant 0.000000e+00 : f32
    %72 = vector.broadcast %cst_54 : f32 to vector<8x256xf32>
    %73 = arith.maximumf %71, %72 : vector<8x256xf32>
    %74 = vector.extract_strided_slice %73 {offsets = [0, 0], sizes = [1, 256], strides = [1, 1]} : vector<8x256xf32> to vector<1x256xf32>
    %c0_55 = arith.constant 0 : index
    %c0_56 = arith.constant 0 : index
    %c0_57 = arith.constant 0 : index
    %75 = vector.load %arg4[%c0_55, %c0_56, %c0_57] : memref<8x256x128xf32, #tpu.memory_space<vmem>>, vector<1x256x128xf32>
    %76 = vector.shape_cast %75 : vector<1x256x128xf32> to vector<256x128xf32>
    %cst_58 = arith.constant dense<0.000000e+00> : vector<1x128xf32>
    %77 = tpu.matmul %74, %76, %cst_58 {dimension_numbers = #tpu.dot_dimension_numbers<[1], [0], [0], [1], [0, 0, 1, 1], [], []>} : vector<1x256xf32>, vector<256x128xf32>, vector<1x128xf32> -> vector<1x128xf32>
    %78 = arith.addf %2, %77 : vector<1x128xf32>
    %79 = vector.extract_strided_slice %73 {offsets = [1, 0], sizes = [1, 256], strides = [1, 1]} : vector<8x256xf32> to vector<1x256xf32>
    %c1_59 = arith.constant 1 : index
    %c0_60 = arith.constant 0 : index
    %c0_61 = arith.constant 0 : index
    %80 = vector.load %arg4[%c1_59, %c0_60, %c0_61] : memref<8x256x128xf32, #tpu.memory_space<vmem>>, vector<1x256x128xf32>
    %81 = vector.shape_cast %80 : vector<1x256x128xf32> to vector<256x128xf32>
    %cst_62 = arith.constant dense<0.000000e+00> : vector<1x128xf32>
    %82 = tpu.matmul %79, %81, %cst_62 {dimension_numbers = #tpu.dot_dimension_numbers<[1], [0], [0], [1], [0, 0, 1, 1], [], []>} : vector<1x256xf32>, vector<256x128xf32>, vector<1x128xf32> -> vector<1x128xf32>
    %83 = arith.addf %78, %82 : vector<1x128xf32>
    %84 = vector.extract_strided_slice %73 {offsets = [2, 0], sizes = [1, 256], strides = [1, 1]} : vector<8x256xf32> to vector<1x256xf32>
    %c2_63 = arith.constant 2 : index
    %c0_64 = arith.constant 0 : index
    %c0_65 = arith.constant 0 : index
    %85 = vector.load %arg4[%c2_63, %c0_64, %c0_65] : memref<8x256x128xf32, #tpu.memory_space<vmem>>, vector<1x256x128xf32>
    %86 = vector.shape_cast %85 : vector<1x256x128xf32> to vector<256x128xf32>
    %cst_66 = arith.constant dense<0.000000e+00> : vector<1x128xf32>
    %87 = tpu.matmul %84, %86, %cst_66 {dimension_numbers = #tpu.dot_dimension_numbers<[1], [0], [0], [1], [0, 0, 1, 1], [], []>} : vector<1x256xf32>, vector<256x128xf32>, vector<1x128xf32> -> vector<1x128xf32>
    %88 = arith.addf %83, %87 : vector<1x128xf32>
    %89 = vector.extract_strided_slice %73 {offsets = [3, 0], sizes = [1, 256], strides = [1, 1]} : vector<8x256xf32> to vector<1x256xf32>
    %c3_67 = arith.constant 3 : index
    %c0_68 = arith.constant 0 : index
    %c0_69 = arith.constant 0 : index
    %90 = vector.load %arg4[%c3_67, %c0_68, %c0_69] : memref<8x256x128xf32, #tpu.memory_space<vmem>>, vector<1x256x128xf32>
    %91 = vector.shape_cast %90 : vector<1x256x128xf32> to vector<256x128xf32>
    %cst_70 = arith.constant dense<0.000000e+00> : vector<1x128xf32>
    %92 = tpu.matmul %89, %91, %cst_70 {dimension_numbers = #tpu.dot_dimension_numbers<[1], [0], [0], [1], [0, 0, 1, 1], [], []>} : vector<1x256xf32>, vector<256x128xf32>, vector<1x128xf32> -> vector<1x128xf32>
    %93 = arith.addf %88, %92 : vector<1x128xf32>
    %94 = vector.extract_strided_slice %73 {offsets = [4, 0], sizes = [1, 256], strides = [1, 1]} : vector<8x256xf32> to vector<1x256xf32>
    %c4_71 = arith.constant 4 : index
    %c0_72 = arith.constant 0 : index
    %c0_73 = arith.constant 0 : index
    %95 = vector.load %arg4[%c4_71, %c0_72, %c0_73] : memref<8x256x128xf32, #tpu.memory_space<vmem>>, vector<1x256x128xf32>
    %96 = vector.shape_cast %95 : vector<1x256x128xf32> to vector<256x128xf32>
    %cst_74 = arith.constant dense<0.000000e+00> : vector<1x128xf32>
    %97 = tpu.matmul %94, %96, %cst_74 {dimension_numbers = #tpu.dot_dimension_numbers<[1], [0], [0], [1], [0, 0, 1, 1], [], []>} : vector<1x256xf32>, vector<256x128xf32>, vector<1x128xf32> -> vector<1x128xf32>
    %98 = arith.addf %93, %97 : vector<1x128xf32>
    %99 = vector.extract_strided_slice %73 {offsets = [5, 0], sizes = [1, 256], strides = [1, 1]} : vector<8x256xf32> to vector<1x256xf32>
    %c5_75 = arith.constant 5 : index
    %c0_76 = arith.constant 0 : index
    %c0_77 = arith.constant 0 : index
    %100 = vector.load %arg4[%c5_75, %c0_76, %c0_77] : memref<8x256x128xf32, #tpu.memory_space<vmem>>, vector<1x256x128xf32>
    %101 = vector.shape_cast %100 : vector<1x256x128xf32> to vector<256x128xf32>
    %cst_78 = arith.constant dense<0.000000e+00> : vector<1x128xf32>
    %102 = tpu.matmul %99, %101, %cst_78 {dimension_numbers = #tpu.dot_dimension_numbers<[1], [0], [0], [1], [0, 0, 1, 1], [], []>} : vector<1x256xf32>, vector<256x128xf32>, vector<1x128xf32> -> vector<1x128xf32>
    %103 = arith.addf %98, %102 : vector<1x128xf32>
    %104 = vector.extract_strided_slice %73 {offsets = [6, 0], sizes = [1, 256], strides = [1, 1]} : vector<8x256xf32> to vector<1x256xf32>
    %c6_79 = arith.constant 6 : index
    %c0_80 = arith.constant 0 : index
    %c0_81 = arith.constant 0 : index
    %105 = vector.load %arg4[%c6_79, %c0_80, %c0_81] : memref<8x256x128xf32, #tpu.memory_space<vmem>>, vector<1x256x128xf32>
    %106 = vector.shape_cast %105 : vector<1x256x128xf32> to vector<256x128xf32>
    %cst_82 = arith.constant dense<0.000000e+00> : vector<1x128xf32>
    %107 = tpu.matmul %104, %106, %cst_82 {dimension_numbers = #tpu.dot_dimension_numbers<[1], [0], [0], [1], [0, 0, 1, 1], [], []>} : vector<1x256xf32>, vector<256x128xf32>, vector<1x128xf32> -> vector<1x128xf32>
    %108 = arith.addf %103, %107 : vector<1x128xf32>
    %109 = vector.extract_strided_slice %73 {offsets = [7, 0], sizes = [1, 256], strides = [1, 1]} : vector<8x256xf32> to vector<1x256xf32>
    %c7_83 = arith.constant 7 : index
    %c0_84 = arith.constant 0 : index
    %c0_85 = arith.constant 0 : index
    %110 = vector.load %arg4[%c7_83, %c0_84, %c0_85] : memref<8x256x128xf32, #tpu.memory_space<vmem>>, vector<1x256x128xf32>
    %111 = vector.shape_cast %110 : vector<1x256x128xf32> to vector<256x128xf32>
    %cst_86 = arith.constant dense<0.000000e+00> : vector<1x128xf32>
    %112 = tpu.matmul %109, %111, %cst_86 {dimension_numbers = #tpu.dot_dimension_numbers<[1], [0], [0], [1], [0, 0, 1, 1], [], []>} : vector<1x256xf32>, vector<256x128xf32>, vector<1x128xf32> -> vector<1x128xf32>
    %113 = arith.addf %108, %112 : vector<1x128xf32>
    %c1_87 = arith.constant 1 : index
    %c0_88 = arith.constant 0 : index
    %114 = vector.load %arg9[%c1_87, %c0_88] : memref<2x128xf32, #tpu.memory_space<vmem>>, vector<1x128xf32>
    tpu.vector_store %arg9[%c1_87, %c0_88], %113 {strides = array<i32>} : memref<2x128xf32, #tpu.memory_space<vmem>>, vector<1x128xf32>,
    %115 = vector.extract_strided_slice %113 {offsets = [0, 0], sizes = [1, 32], strides = [1, 1]} : vector<1x128xf32> to vector<1x32xf32>
    %cst_89 = arith.constant 0.000000e+00 : f32
    %116 = vector.broadcast %cst_89 : f32 to vector<1x32xf32>
    %117 = arith.maximumf %115, %116 : vector<1x32xf32>
    %cst_90 = arith.constant dense<0.000000e+00> : vector<1x128xf32>
    %118 = tpu.matmul %117, %3, %cst_90 {dimension_numbers = #tpu.dot_dimension_numbers<[1], [0], [0], [1], [0, 0, 1, 1], [], []>} : vector<1x32xf32>, vector<32x128xf32>, vector<1x128xf32> -> vector<1x128xf32>
    %119 = arith.addf %118, %4 : vector<1x128xf32>
    %c1_91 = arith.constant 1 : index
    %c0_92 = arith.constant 0 : index
    %120 = vector.load %arg10[%c1_91, %c0_92] : memref<2x128xf32, #tpu.memory_space<vmem>>, vector<1x128xf32>
    tpu.vector_store %arg10[%c1_91, %c0_92], %119 {strides = array<i32>} : memref<2x128xf32, #tpu.memory_space<vmem>>, vector<1x128xf32>,
    return
  }
  func.func @transform_0(%arg0: i32) -> (i32, i32, i32) {
    %c0_i32 = arith.constant 0 : i32
    %c0_i32_0 = arith.constant 0 : i32
    %c0_i32_1 = arith.constant 0 : i32
    %c0_i32_2 = arith.constant 0 : i32
    return %c0_i32, %c0_i32_0, %c0_i32_1 : i32, i32, i32
  }
  func.func @transform_1(%arg0: i32) -> (i32, i32) {
    %c0_i32 = arith.constant 0 : i32
    %c0_i32_0 = arith.constant 0 : i32
    %c0_i32_1 = arith.constant 0 : i32
    return %c0_i32, %c0_i32_0 : i32, i32
  }
  func.func @transform_2(%arg0: i32) -> (i32, i32) {
    %c0_i32 = arith.constant 0 : i32
    %c0_i32_0 = arith.constant 0 : i32
    %c0_i32_1 = arith.constant 0 : i32
    return %c0_i32, %c0_i32_0 : i32, i32
  }
  func.func @transform_3(%arg0: i32) -> (i32, i32, i32) {
    %c0_i32 = arith.constant 0 : i32
    %c0_i32_0 = arith.constant 0 : i32
    %c0_i32_1 = arith.constant 0 : i32
    %c0_i32_2 = arith.constant 0 : i32
    return %c0_i32, %c0_i32_0, %c0_i32_1 : i32, i32, i32
  }
  func.func @transform_4(%arg0: i32) -> (i32, i32) {
    %c0_i32 = arith.constant 0 : i32
    %c0_i32_0 = arith.constant 0 : i32
    %c0_i32_1 = arith.constant 0 : i32
    return %c0_i32, %c0_i32_0 : i32, i32
  }
  func.func @transform_5(%arg0: i32) -> (i32, i32) {
    %c0_i32 = arith.constant 0 : i32
    %c0_i32_0 = arith.constant 0 : i32
    %c0_i32_1 = arith.constant 0 : i32
    return %c0_i32, %c0_i32_0 : i32, i32
  }
  func.func @transform_6(%arg0: i32) -> (i32, i32) {
    %c0_i32 = arith.constant 0 : i32
    %c0_i32_0 = arith.constant 0 : i32
    %c0_i32_1 = arith.constant 0 : i32
    return %c0_i32, %c0_i32_0 : i32, i32
  }
  func.func @transform_7(%arg0: i32) -> (i32, i32, i32) {
    %c0_i32 = arith.constant 0 : i32
    %c0_i32_0 = arith.constant 0 : i32
    %c0_i32_1 = arith.constant 0 : i32
    %c0_i32_2 = arith.constant 0 : i32
    return %c0_i32, %c0_i32_0, %c0_i32_1 : i32, i32, i32
  }
  func.func @transform_8(%arg0: i32) -> (i32, i32) {
    %c0_i32 = arith.constant 0 : i32
    %c0_i32_0 = arith.constant 0 : i32
    %c0_i32_1 = arith.constant 0 : i32
    return %c0_i32, %c0_i32_0 : i32, i32
  }
  func.func @transform_9(%arg0: i32) -> (i32, i32) {
    %c0_i32 = arith.constant 0 : i32
    %c0_i32_0 = arith.constant 0 : i32
    %c0_i32_1 = arith.constant 0 : i32
    return %c0_i32, %c0_i32_0 : i32, i32
  }
}

</mosaic_0001>

<llo_original>
// kernel: sequential_wrapper_forward.1
$region0: #{sequential_wrapper_forward.1}
  #allocation0 [shape = 'u32[]', space=smem, size = 0x4, offset = 0x4, fixed_abs, tag = 'smem constant byte address 0x4 - core index']
  #allocation1 [shape = 'u32[144,128]{1,0:T(1,128)}', space=vmem, size = 0x12000, scoped, tag = 'internal scratch']
  %s0 = inlined_call_operand.vmem [shape: f32[2,36,256], index: 0, kind: input, shape index: {}]
  %s1 = inlined_call_operand.vmem [shape: f32[32,36], index: 1, kind: input, shape index: {}]
  %s2 = inlined_call_operand.vmem [shape: f32[32,1], index: 2, kind: input, shape index: {}]
  %s3 = inlined_call_operand.vmem [shape: f32[8,256,128], index: 3, kind: input, shape index: {}]
  %s4 = inlined_call_operand.vmem [shape: f32[1,128], index: 4, kind: input, shape index: {}]
  %s5 = inlined_call_operand.vmem [shape: f32[32,128], index: 5, kind: input, shape index: {}]
  %s6 = inlined_call_operand.vmem [shape: f32[1,128], index: 6, kind: input, shape index: {}]
  %s7 = inlined_call_operand.vmem [shape: f32[2,32,256], index: 7, kind: output, shape index: {0}]
  %s8 = inlined_call_operand.vmem [shape: f32[2,128], index: 8, kind: output, shape index: {1}]
  %s9 = inlined_call_operand.vmem [shape: f32[2,128], index: 9, kind: output, shape index: {2}]
  %10 = xla_tuple %s7, %s8, %s9
  %s11 = sld [smem:[#allocation0]]
  $region54: #{sequential_wrapper_forward.1} parent=0
    _
  %s13 = ssub.s32 1, %s11
  %s14 = scalar_select 0, %s13, %s11
  // Predicated region
  $region2: #{sequential_wrapper_forward.1} parent=0 // pred_check
    _
  $region3: #{sequential_wrapper_forward.1} parent=0 // pred_check_branch
    %16 = sbr.rel (0) target = $region5
  $region4: #{sequential_wrapper_forward.1} parent=0 // pred_region
    _
  $region5: #{sequential_wrapper_forward.1} parent=0 // pred_fallthru
    _
  // Predicated region
  $region6: #{sequential_wrapper_forward.1} parent=0 // pred_check
    _
  $region7: #{sequential_wrapper_forward.1} parent=0 // pred_check_branch
    %18 = sbr.rel (0) target = $region9
  $region8: #{sequential_wrapper_forward.1} parent=0 // pred_region
    _
  $region9: #{sequential_wrapper_forward.1} parent=0 // pred_fallthru
    _
  // Predicated region
  $region10: #{sequential_wrapper_forward.1} parent=0 // pred_check
    _
  $region11: #{sequential_wrapper_forward.1} parent=0 // pred_check_branch
    %20 = sbr.rel (0) target = $region13
  $region12: #{sequential_wrapper_forward.1} parent=0 // pred_region
    _
  $region13: #{sequential_wrapper_forward.1} parent=0 // pred_fallthru
    _
  // Predicated region
  $region14: #{sequential_wrapper_forward.1} parent=0 // pred_check
    _
  $region15: #{sequential_wrapper_forward.1} parent=0 // pred_check_branch
    %22 = sbr.rel (0) target = $region17
  $region16: #{sequential_wrapper_forward.1} parent=0 // pred_region
    _
  $region17: #{sequential_wrapper_forward.1} parent=0 // pred_fallthru
    _
  // Predicated region
  $region18: #{sequential_wrapper_forward.1} parent=0 // pred_check
    _
  $region19: #{sequential_wrapper_forward.1} parent=0 // pred_check_branch
    %24 = sbr.rel (0) target = $region21
  $region20: #{sequential_wrapper_forward.1} parent=0 // pred_region
    _
  $region21: #{sequential_wrapper_forward.1} parent=0 // pred_fallthru
    _
  // Predicated region
  $region22: #{sequential_wrapper_forward.1} parent=0 // pred_check
    _
  $region23: #{sequential_wrapper_forward.1} parent=0 // pred_check_branch
    %26 = sbr.rel (0) target = $region25
  $region24: #{sequential_wrapper_forward.1} parent=0 // pred_region
    _
  $region25: #{sequential_wrapper_forward.1} parent=0 // pred_fallthru
    _
  // Predicated region
  $region26: #{sequential_wrapper_forward.1} parent=0 // pred_check
    _
  $region27: #{sequential_wrapper_forward.1} parent=0 // pred_check_branch
    %28 = sbr.rel (0) target = $region29
  $region28: #{sequential_wrapper_forward.1} parent=0 // pred_region
    _
  $region29: #{sequential_wrapper_forward.1} parent=0 // pred_fallthru
    _
  %v29 = vld [vmem:[%s1] sm:$0xff]
  %v30 = vld [vmem:[%s1 + $0x8] sm:$0xff]
  %v31 = vld [vmem:[%s1 + $0x10] sm:$0xff]
  %v32 = vld [vmem:[%s1 + $0x18] sm:$0xff]
  %v33 = vld [vmem:[%s2] sm:$0xff]
  %v34 = vld [vmem:[%s2 + $0x8] sm:$0xff]
  %v35 = vld [vmem:[%s2 + $0x10] sm:$0xff]
  %v36 = vld [vmem:[%s2 + $0x18] sm:$0xff]
  %v37 = vld [vmem:[%s4] sm:$0x1]
  %v38 = vld [vmem:[%s5] sm:$0xff]
  %v39 = vld [vmem:[%s5 + $0x8] sm:$0xff]
  %v40 = vld [vmem:[%s5 + $0x10] sm:$0xff]
  %v41 = vld [vmem:[%s5 + $0x18] sm:$0xff]
  %v42 = vld [vmem:[%s6] sm:$0x1]
  %v43 = vld [vmem:[%s0] sm:$0xff]
  %v44 = vld [vmem:[%s0 + $0x8] sm:$0xff]
  %v45 = vld [vmem:[%s0 + $0x10] sm:$0xff]
  %v46 = vld [vmem:[%s0 + $0x18] sm:$0xff]
  %v47 = vld [vmem:[%s0 + $0x20] sm:$0xff]
  %v48 = vld [vmem:[%s0 + $0x28] sm:$0xff]
  %v49 = vld [vmem:[%s0 + $0x30] sm:$0xff]
  %v50 = vld [vmem:[%s0 + $0x38] sm:$0xff]
  %v51 = vld [vmem:[%s0 + $0x40] sm:$0xf]
  %v52 = vld [vmem:[%s0 + $0x48] sm:$0xf]
  %54 = vset.pattern.permute.xlu0 0
  %55 = vperm.xlu0 %54, %v33
  %v56 = vpop.permute.xlu0 %55
  %59 = vset.pattern.permute.xlu0 0
  %60 = vperm.xlu0 %59, %v34
  %v61 = vpop.permute.xlu0 %60
  %64 = vset.pattern.permute.xlu0 0
  %65 = vperm.xlu0 %64, %v35
  %v66 = vpop.permute.xlu0 %65
  %69 = vset.pattern.permute.xlu0 0
  %70 = vperm.xlu0 %69, %v36
  %v71 = vpop.permute.xlu0 %70
  %vm73 = vcmask 293888
  %v75 = vsel %vm73, %v29, 0
  %v78 = vsel %vm73, %v30, 0
  %v81 = vsel %vm73, %v31, 0
  %v84 = vsel %vm73, %v32, 0
  %vm86 = vcmask 1043456
  %v88 = vsel %vm86, %v51, 0
  %v91 = vsel %vm86, %v52, 0
  %93 = vmatprep.subr.mxu0 %v44
  %94 = vmatpush1.msra.mxu0 %v43
  %95 = vmatprep.subr.mxu0 %v46
  %96 = vmatpush1.msra.mxu0 %v45
  %97 = vmatprep.subr.mxu0 %v48
  %98 = vmatpush1.msra.mxu0 %v47
  %99 = vmatprep.subr.mxu0 %v50
  %100 = vmatpush1.msra.mxu0 %v49
  %101 = vmatprep.subr.mxu0 %v91
  %102 = vmatpush1.msra.mxu0 %v88
  %103 = vmatprep.subr.mxu0 0.0
  %104 = vmatpush1.msra.mxu0 0.0
  %105 = vmatprep.subr.mxu0 0.0
  %106 = vmatpush1.msra.mxu0 0.0
  %107 = vmatprep.subr.mxu0 0.0
  %108 = vmatpush1.msra.mxu0 0.0
  %109 = vmatprep.subr.mxu0 0.0
  %110 = vmatpush1.msra.mxu0 0.0
  %111 = vmatprep.subr.mxu0 0.0
  %112 = vmatpush1.msra.mxu0 0.0
  %113 = vmatprep.subr.mxu0 0.0
  %114 = vmatpush1.msra.mxu0 0.0
  %115 = vmatprep.subr.mxu0 0.0
  %116 = vmatpush1.msra.mxu0 0.0
  %117 = vmatprep.subr.mxu0 0.0
  %118 = vmatpush1.msra.mxu0 0.0
  %119 = vmatprep.subr.mxu0 0.0
  %120 = vmatpush1.msra.mxu0 0.0
  %121 = vmatprep.subr.mxu0 0.0
  %122 = vmatpush1.msra.mxu0 0.0
  %123 = vmatprep.subr.mxu0 0.0
  %124 = vmatpush1.msra.mxu0 0.0
  %125 = vmatprep.subr.mxu0 0.0
  %126 = vmatpush1.msra.mxu0 0.0
  %127 = vmatprep.subr.mxu0 0.0
  %128 = vmatpush1.msra.mxu0 0.0
  %129 = vmatprep.subr.mxu0 0.0
  %130 = vmatpush1.msra.mxu0 0.0
  %131 = vmatprep.subr.mxu0 0.0
  %132 = vmatpush1.msra.mxu0 0.0
  %133 = vmatprep.subr.mxu0 0.0
  %134 = vmatpush1.msra.mxu0 0.0
  %135 = vmatprep.subr.mxu0 0.0
  %136 = vmatpush1.msra.mxu0 0.0
  %137 = vmatprep.subr.mxu0 0.0
  %138 = vmatpush1.msra.mxu0 0.0
  %139 = vmatprep.subr.mxu0 0.0
  %140 = vmatpush1.msra.mxu0 0.0
  %141 = vmatprep.subr.mxu0 0.0
  %142 = vmatpush1.msra.mxu0 0.0
  %143 = vmatprep.subr.mxu0 0.0
  %144 = vmatpush1.msra.mxu0 0.0
  %145 = vmatprep.subr.mxu0 0.0
  %146 = vmatpush1.msra.mxu0 0.0
  %147 = vmatprep.subr.mxu0 0.0
  %148 = vmatpush1.msra.mxu0 0.0
  %149 = vmatprep.subr.mxu0 0.0
  %150 = vmatpush1.msra.mxu0 0.0
  %151 = vmatprep.subr.mxu0 0.0
  %152 = vmatpush1.msra.mxu0 0.0
  %153 = vmatprep.subr.mxu0 0.0
  %154 = vmatpush1.msra.mxu0 0.0
  %155 = vmatprep.subr.mxu0 0.0
  %156 = vmatpush1.msra.mxu0 0.0
  %157 = vmatprep.mubr.f32.mxu0 0.0
  %158 = vmatmul.mubr.f32.gmra.mrb[0].mxu0 %v75
  %v159 = vpop.f32.mrb[0].mxu0
  %v160 = vadd.f32 %v56, %v159
  %v161 = vpop.f32.mrb[0].mxu0
  %v162 = vadd.f32 %v56, %v161
  %163 = vmatprep.mubr.f32.mxu0 0.0
  %164 = vmatmul.mubr.f32.gmra.mrb[0].mxu0 %v78
  %v165 = vpop.f32.mrb[0].mxu0
  %v166 = vadd.f32 %v61, %v165
  %v167 = vpop.f32.mrb[0].mxu0
  %v168 = vadd.f32 %v61, %v167
  %169 = vmatprep.mubr.f32.mxu0 0.0
  %170 = vmatmul.mubr.f32.gmra.mrb[0].mxu0 %v81
  %v171 = vpop.f32.mrb[0].mxu0
  %v172 = vadd.f32 %v66, %v171
  %v173 = vpop.f32.mrb[0].mxu0
  %v174 = vadd.f32 %v66, %v173
  %175 = vmatprep.mubr.f32.mxu0 0.0
  %176 = vmatmul.mubr.f32.gmra.mrb[0].mxu0 %v84
  %v177 = vpop.f32.mrb[0].mxu0
  %v178 = vadd.f32 %v71, %v177
  %v179 = vpop.f32.mrb[0].mxu0
  %v180 = vadd.f32 %v71, %v179
  %181 = vdwg.mxu0
  %182 = vst [vmem:[%s7] sm:$0xff] %v160
  %183 = vst [vmem:[%s7 + $0x8] sm:$0xff] %v162
  %184 = vst [vmem:[%s7 + $0x10] sm:$0xff] %v166
  %185 = vst [vmem:[%s7 + $0x18] sm:$0xff] %v168
  %186 = vst [vmem:[%s7 + $0x20] sm:$0xff] %v172
  %187 = vst [vmem:[%s7 + $0x28] sm:$0xff] %v174
  %188 = vst [vmem:[%s7 + $0x30] sm:$0xff] %v178
  %189 = vst [vmem:[%s7 + $0x38] sm:$0xff] %v180
  %v190 = vmax.f32 %v160, 0.0
  %v191 = vmax.f32 %v162, 0.0
  %v192 = vld [vmem:[%s3] sm:$0xff]
  %v193 = vld [vmem:[%s3 + $0x8] sm:$0xff]
  %v194 = vld [vmem:[%s3 + $0x10] sm:$0xff]
  %v195 = vld [vmem:[%s3 + $0x18] sm:$0xff]
  %v196 = vld [vmem:[%s3 + $0x20] sm:$0xff]
  %v197 = vld [vmem:[%s3 + $0x28] sm:$0xff]
  %v198 = vld [vmem:[%s3 + $0x30] sm:$0xff]
  %v199 = vld [vmem:[%s3 + $0x38] sm:$0xff]
  %v200 = vld [vmem:[%s3 + $0x40] sm:$0xff]
  %v201 = vld [vmem:[%s3 + $0x48] sm:$0xff]
  %v202 = vld [vmem:[%s3 + $0x50] sm:$0xff]
  %v203 = vld [vmem:[%s3 + $0x58] sm:$0xff]
  %v204 = vld [vmem:[%s3 + $0x60] sm:$0xff]
  %v205 = vld [vmem:[%s3 + $0x68] sm:$0xff]
  %v206 = vld [vmem:[%s3 + $0x70] sm:$0xff]
  %v207 = vld [vmem:[%s3 + $0x78] sm:$0xff]
  %v208 = vld [vmem:[%s3 + $0x80] sm:$0xff]
  %v209 = vld [vmem:[%s3 + $0x88] sm:$0xff]
  %v210 = vld [vmem:[%s3 + $0x90] sm:$0xff]
  %v211 = vld [vmem:[%s3 + $0x98] sm:$0xff]
  %v212 = vld [vmem:[%s3 + $0xa0] sm:$0xff]
  %v213 = vld [vmem:[%s3 + $0xa8] sm:$0xff]
  %v214 = vld [vmem:[%s3 + $0xb0] sm:$0xff]
  %v215 = vld [vmem:[%s3 + $0xb8] sm:$0xff]
  %v216 = vld [vmem:[%s3 + $0xc0] sm:$0xff]
  %v217 = vld [vmem:[%s3 + $0xc8] sm:$0xff]
  %v218 = vld [vmem:[%s3 + $0xd0] sm:$0xff]
  %v219 = vld [vmem:[%s3 + $0xd8] sm:$0xff]
  %v220 = vld [vmem:[%s3 + $0xe0] sm:$0xff]
  %v221 = vld [vmem:[%s3 + $0xe8] sm:$0xff]
  %v222 = vld [vmem:[%s3 + $0xf0] sm:$0xff]
  %v223 = vld [vmem:[%s3 + $0xf8] sm:$0xff]
  %224 = vmatprep.subr.mxu0 0.0
  %225 = vmatpush1.msra.mxu0 %v192
  %226 = vmatprep.subr.mxu0 0.0
  %227 = vmatpush1.msra.mxu0 %v193
  %228 = vmatprep.subr.mxu0 0.0
  %229 = vmatpush1.msra.mxu0 %v194
  %230 = vmatprep.subr.mxu0 0.0
  %231 = vmatpush1.msra.mxu0 %v195
  %232 = vmatprep.subr.mxu0 0.0
  %233 = vmatpush1.msra.mxu0 %v196
  %234 = vmatprep.subr.mxu0 0.0
  %235 = vmatpush1.msra.mxu0 %v197
  %236 = vmatprep.subr.mxu0 0.0
  %237 = vmatpush1.msra.mxu0 %v198
  %238 = vmatprep.subr.mxu0 0.0
  %239 = vmatpush1.msra.mxu0 %v199
  %240 = vmatprep.subr.mxu0 0.0
  %241 = vmatpush1.msra.mxu0 %v200
  %242 = vmatprep.subr.mxu0 0.0
  %243 = vmatpush1.msra.mxu0 %v201
  %244 = vmatprep.subr.mxu0 0.0
  %245 = vmatpush1.msra.mxu0 %v202
  %246 = vmatprep.subr.mxu0 0.0
  %247 = vmatpush1.msra.mxu0 %v203
  %248 = vmatprep.subr.mxu0 0.0
  %249 = vmatpush1.msra.mxu0 %v204
  %250 = vmatprep.subr.mxu0 0.0
  %251 = vmatpush1.msra.mxu0 %v205
  %252 = vmatprep.subr.mxu0 0.0
  %253 = vmatpush1.msra.mxu0 %v206
  %254 = vmatprep.subr.mxu0 0.0
  %255 = vmatpush1.msra.mxu0 %v207
  %256 = vmatprep.subr.mxu0 0.0
  %257 = vmatpush1.msra.mxu0 %v208
  %258 = vmatprep.subr.mxu0 0.0
  %259 = vmatpush1.msra.mxu0 %v209
  %260 = vmatprep.subr.mxu0 0.0
  %261 = vmatpush1.msra.mxu0 %v210
  %262 = vmatprep.subr.mxu0 0.0
  %263 = vmatpush1.msra.mxu0 %v211
  %264 = vmatprep.subr.mxu0 0.0
  %265 = vmatpush1.msra.mxu0 %v212
  %266 = vmatprep.subr.mxu0 0.0
  %267 = vmatpush1.msra.mxu0 %v213
  %268 = vmatprep.subr.mxu0 0.0
  %269 = vmatpush1.msra.mxu0 %v214
  %270 = vmatprep.subr.mxu0 0.0
  %271 = vmatpush1.msra.mxu0 %v215
  %272 = vmatprep.subr.mxu0 0.0
  %273 = vmatpush1.msra.mxu0 %v216
  %274 = vmatprep.subr.mxu0 0.0
  %275 = vmatpush1.msra.mxu0 %v217
  %276 = vmatprep.subr.mxu0 0.0
  %277 = vmatpush1.msra.mxu0 %v218
  %278 = vmatprep.subr.mxu0 0.0
  %279 = vmatpush1.msra.mxu0 %v219
  %280 = vmatprep.subr.mxu0 0.0
  %281 = vmatpush1.msra.mxu0 %v220
  %282 = vmatprep.subr.mxu0 0.0
  %283 = vmatpush1.msra.mxu0 %v221
  %284 = vmatprep.subr.mxu0 0.0
  %285 = vmatpush1.msra.mxu0 %v222
  %286 = vmatprep.subr.mxu0 0.0
  %287 = vmatpush1.msra.mxu0 %v223
  %288 = vmatprep.mubr.f32.mxu0 %v191
  %289 = vmatmul.mubr.f32.gmra.mrb[0].mxu0 %v190
  %v290 = vpop.f32.mrb[0].mxu0
  %v291 = vadd.f32 0.0, %v290
  %v292 = vpop.f32.mrb[0].mxu0
  %293 = vdwg.mxu0
  %v294 = vadd.f32 %v37, %v291
  %s295 = scalar_lea.vmem %s3, 256
  %v296 = vld [vmem:[%s295] sm:$0xff]
  %v297 = vld [vmem:[%s295 + $0x8] sm:$0xff]
  %v298 = vld [vmem:[%s295 + $0x10] sm:$0xff]
  %v299 = vld [vmem:[%s295 + $0x18] sm:$0xff]
  %v300 = vld [vmem:[%s295 + $0x20] sm:$0xff]
  %v301 = vld [vmem:[%s295 + $0x28] sm:$0xff]
  %v302 = vld [vmem:[%s295 + $0x30] sm:$0xff]
  %v303 = vld [vmem:[%s295 + $0x38] sm:$0xff]
  %v304 = vld [vmem:[%s295 + $0x40] sm:$0xff]
  %v305 = vld [vmem:[%s295 + $0x48] sm:$0xff]
  %v306 = vld [vmem:[%s295 + $0x50] sm:$0xff]
  %v307 = vld [vmem:[%s295 + $0x58] sm:$0xff]
  %v308 = vld [vmem:[%s295 + $0x60] sm:$0xff]
  %v309 = vld [vmem:[%s295 + $0x68] sm:$0xff]
  %v310 = vld [vmem:[%s295 + $0x70] sm:$0xff]
  %v311 = vld [vmem:[%s295 + $0x78] sm:$0xff]
  %v312 = vld [vmem:[%s295 + $0x80] sm:$0xff]
  %v313 = vld [vmem:[%s295 + $0x88] sm:$0xff]
  %v314 = vld [vmem:[%s295 + $0x90] sm:$0xff]
  %v315 = vld [vmem:[%s295 + $0x98] sm:$0xff]
  %v316 = vld [vmem:[%s295 + $0xa0] sm:$0xff]
  %v317 = vld [vmem:[%s295 + $0xa8] sm:$0xff]
  %v318 = vld [vmem:[%s295 + $0xb0] sm:$0xff]
  %v319 = vld [vmem:[%s295 + $0xb8] sm:$0xff]
  %v320 = vld [vmem:[%s295 + $0xc0] sm:$0xff]
  %v321 = vld [vmem:[%s295 + $0xc8] sm:$0xff]
  %v322 = vld [vmem:[%s295 + $0xd0] sm:$0xff]
  %v323 = vld [vmem:[%s295 + $0xd8] sm:$0xff]
  %v324 = vld [vmem:[%s295 + $0xe0] sm:$0xff]
  %v325 = vld [vmem:[%s295 + $0xe8] sm:$0xff]
  %v326 = vld [vmem:[%s295 + $0xf0] sm:$0xff]
  %v327 = vld [vmem:[%s295 + $0xf8] sm:$0xff]
  %v330 = vrot.slane %v190, 1
  %v331 = vrot.slane %v191, 1
  %334 = vmatprep.subr.mxu0 0.0
  %335 = vmatpush1.msra.mxu0 %v296
  %336 = vmatprep.subr.mxu0 0.0
  %337 = vmatpush1.msra.mxu0 %v297
  %338 = vmatprep.subr.mxu0 0.0
  %339 = vmatpush1.msra.mxu0 %v298
  %340 = vmatprep.subr.mxu0 0.0
  %341 = vmatpush1.msra.mxu0 %v299
  %342 = vmatprep.subr.mxu0 0.0
  %343 = vmatpush1.msra.mxu0 %v300
  %344 = vmatprep.subr.mxu0 0.0
  %345 = vmatpush1.msra.mxu0 %v301
  %346 = vmatprep.subr.mxu0 0.0
  %347 = vmatpush1.msra.mxu0 %v302
  %348 = vmatprep.subr.mxu0 0.0
  %349 = vmatpush1.msra.mxu0 %v303
  %350 = vmatprep.subr.mxu0 0.0
  %351 = vmatpush1.msra.mxu0 %v304
  %352 = vmatprep.subr.mxu0 0.0
  %353 = vmatpush1.msra.mxu0 %v305
  %354 = vmatprep.subr.mxu0 0.0
  %355 = vmatpush1.msra.mxu0 %v306
  %356 = vmatprep.subr.mxu0 0.0
  %357 = vmatpush1.msra.mxu0 %v307
  %358 = vmatprep.subr.mxu0 0.0
  %359 = vmatpush1.msra.mxu0 %v308
  %360 = vmatprep.subr.mxu0 0.0
  %361 = vmatpush1.msra.mxu0 %v309
  %362 = vmatprep.subr.mxu0 0.0
  %363 = vmatpush1.msra.mxu0 %v310
  %364 = vmatprep.subr.mxu0 0.0
  %365 = vmatpush1.msra.mxu0 %v311
  %366 = vmatprep.subr.mxu0 0.0
  %367 = vmatpush1.msra.mxu0 %v312
  %368 = vmatprep.subr.mxu0 0.0
  %369 = vmatpush1.msra.mxu0 %v313
  %370 = vmatprep.subr.mxu0 0.0
  %371 = vmatpush1.msra.mxu0 %v314
  %372 = vmatprep.subr.mxu0 0.0
  %373 = vmatpush1.msra.mxu0 %v315
  %374 = vmatprep.subr.mxu0 0.0
  %375 = vmatpush1.msra.mxu0 %v316
  %376 = vmatprep.subr.mxu0 0.0
  %377 = vmatpush1.msra.mxu0 %v317
  %378 = vmatprep.subr.mxu0 0.0
  %379 = vmatpush1.msra.mxu0 %v318
  %380 = vmatprep.subr.mxu0 0.0
  %381 = vmatpush1.msra.mxu0 %v319
  %382 = vmatprep.subr.mxu0 0.0
  %383 = vmatpush1.msra.mxu0 %v320
  %384 = vmatprep.subr.mxu0 0.0
  %385 = vmatpush1.msra.mxu0 %v321
  %386 = vmatprep.subr.mxu0 0.0
  %387 = vmatpush1.msra.mxu0 %v322
  %388 = vmatprep.subr.mxu0 0.0
  %389 = vmatpush1.msra.mxu0 %v323
  %390 = vmatprep.subr.mxu0 0.0
  %391 = vmatpush1.msra.mxu0 %v324
  %392 = vmatprep.subr.mxu0 0.0
  %393 = vmatpush1.msra.mxu0 %v325
  %394 = vmatprep.subr.mxu0 0.0
  %395 = vmatpush1.msra.mxu0 %v326
  %396 = vmatprep.subr.mxu0 0.0
  %397 = vmatpush1.msra.mxu0 %v327
  %398 = vmatprep.mubr.f32.mxu0 %v331
  %399 = vmatmul.mubr.f32.gmra.mrb[0].mxu0 %v330
  %v400 = vpop.f32.mrb[0].mxu0
  %v401 = vadd.f32 0.0, %v400
  %v402 = vpop.f32.mrb[0].mxu0
  %403 = vdwg.mxu0
  %v404 = vadd.f32 %v294, %v401
  %s405 = scalar_lea.vmem %s3, 512
  %v406 = vld [vmem:[%s405] sm:$0xff]
  %v407 = vld [vmem:[%s405 + $0x8] sm:$0xff]
  %v408 = vld [vmem:[%s405 + $0x10] sm:$0xff]
  %v409 = vld [vmem:[%s405 + $0x18] sm:$0xff]
  %v410 = vld [vmem:[%s405 + $0x20] sm:$0xff]
  %v411 = vld [vmem:[%s405 + $0x28] sm:$0xff]
  %v412 = vld [vmem:[%s405 + $0x30] sm:$0xff]
  %v413 = vld [vmem:[%s405 + $0x38] sm:$0xff]
  %v414 = vld [vmem:[%s405 + $0x40] sm:$0xff]
  %v415 = vld [vmem:[%s405 + $0x48] sm:$0xff]
  %v416 = vld [vmem:[%s405 + $0x50] sm:$0xff]
  %v417 = vld [vmem:[%s405 + $0x58] sm:$0xff]
  %v418 = vld [vmem:[%s405 + $0x60] sm:$0xff]
  %v419 = vld [vmem:[%s405 + $0x68] sm:$0xff]
  %v420 = vld [vmem:[%s405 + $0x70] sm:$0xff]
  %v421 = vld [vmem:[%s405 + $0x78] sm:$0xff]
  %v422 = vld [vmem:[%s405 + $0x80] sm:$0xff]
  %v423 = vld [vmem:[%s405 + $0x88] sm:$0xff]
  %v424 = vld [vmem:[%s405 + $0x90] sm:$0xff]
  %v425 = vld [vmem:[%s405 + $0x98] sm:$0xff]
  %v426 = vld [vmem:[%s405 + $0xa0] sm:$0xff]
  %v427 = vld [vmem:[%s405 + $0xa8] sm:$0xff]
  %v428 = vld [vmem:[%s405 + $0xb0] sm:$0xff]
  %v429 = vld [vmem:[%s405 + $0xb8] sm:$0xff]
  %v430 = vld [vmem:[%s405 + $0xc0] sm:$0xff]
  %v431 = vld [vmem:[%s405 + $0xc8] sm:$0xff]
  %v432 = vld [vmem:[%s405 + $0xd0] sm:$0xff]
  %v433 = vld [vmem:[%s405 + $0xd8] sm:$0xff]
  %v434 = vld [vmem:[%s405 + $0xe0] sm:$0xff]
  %v435 = vld [vmem:[%s405 + $0xe8] sm:$0xff]
  %v436 = vld [vmem:[%s405 + $0xf0] sm:$0xff]
  %v437 = vld [vmem:[%s405 + $0xf8] sm:$0xff]
  %v438 = vrot.slane %v190, 2
  %v439 = vrot.slane %v191, 2
  %442 = vmatprep.subr.mxu0 0.0
  %443 = vmatpush1.msra.mxu0 %v406
  %444 = vmatprep.subr.mxu0 0.0
  %445 = vmatpush1.msra.mxu0 %v407
  %446 = vmatprep.subr.mxu0 0.0
  %447 = vmatpush1.msra.mxu0 %v408
  %448 = vmatprep.subr.mxu0 0.0
  %449 = vmatpush1.msra.mxu0 %v409
  %450 = vmatprep.subr.mxu0 0.0
  %451 = vmatpush1.msra.mxu0 %v410
  %452 = vmatprep.subr.mxu0 0.0
  %453 = vmatpush1.msra.mxu0 %v411
  %454 = vmatprep.subr.mxu0 0.0
  %455 = vmatpush1.msra.mxu0 %v412
  %456 = vmatprep.subr.mxu0 0.0
  %457 = vmatpush1.msra.mxu0 %v413
  %458 = vmatprep.subr.mxu0 0.0
  %459 = vmatpush1.msra.mxu0 %v414
  %460 = vmatprep.subr.mxu0 0.0
  %461 = vmatpush1.msra.mxu0 %v415
  %462 = vmatprep.subr.mxu0 0.0
  %463 = vmatpush1.msra.mxu0 %v416
  %464 = vmatprep.subr.mxu0 0.0
  %465 = vmatpush1.msra.mxu0 %v417
  %466 = vmatprep.subr.mxu0 0.0
  %467 = vmatpush1.msra.mxu0 %v418
  %468 = vmatprep.subr.mxu0 0.0
  %469 = vmatpush1.msra.mxu0 %v419
  %470 = vmatprep.subr.mxu0 0.0
  %471 = vmatpush1.msra.mxu0 %v420
  %472 = vmatprep.subr.mxu0 0.0
  %473 = vmatpush1.msra.mxu0 %v421
  %474 = vmatprep.subr.mxu0 0.0
  %475 = vmatpush1.msra.mxu0 %v422
  %476 = vmatprep.subr.mxu0 0.0
  %477 = vmatpush1.msra.mxu0 %v423
  %478 = vmatprep.subr.mxu0 0.0
  %479 = vmatpush1.msra.mxu0 %v424
  %480 = vmatprep.subr.mxu0 0.0
  %481 = vmatpush1.msra.mxu0 %v425
  %482 = vmatprep.subr.mxu0 0.0
  %483 = vmatpush1.msra.mxu0 %v426
  %484 = vmatprep.subr.mxu0 0.0
  %485 = vmatpush1.msra.mxu0 %v427
  %486 = vmatprep.subr.mxu0 0.0
  %487 = vmatpush1.msra.mxu0 %v428
  %488 = vmatprep.subr.mxu0 0.0
  %489 = vmatpush1.msra.mxu0 %v429
  %490 = vmatprep.subr.mxu0 0.0
  %491 = vmatpush1.msra.mxu0 %v430
  %492 = vmatprep.subr.mxu0 0.0
  %493 = vmatpush1.msra.mxu0 %v431
  %494 = vmatprep.subr.mxu0 0.0
  %495 = vmatpush1.msra.mxu0 %v432
  %496 = vmatprep.subr.mxu0 0.0
  %497 = vmatpush1.msra.mxu0 %v433
  %498 = vmatprep.subr.mxu0 0.0
  %499 = vmatpush1.msra.mxu0 %v434
  %500 = vmatprep.subr.mxu0 0.0
  %501 = vmatpush1.msra.mxu0 %v435
  %502 = vmatprep.subr.mxu0 0.0
  %503 = vmatpush1.msra.mxu0 %v436
  %504 = vmatprep.subr.mxu0 0.0
  %505 = vmatpush1.msra.mxu0 %v437
  %506 = vmatprep.mubr.f32.mxu0 %v439
  %507 = vmatmul.mubr.f32.gmra.mrb[0].mxu0 %v438
  %v508 = vpop.f32.mrb[0].mxu0
  %v509 = vadd.f32 0.0, %v508
  %v510 = vpop.f32.mrb[0].mxu0
  %511 = vdwg.mxu0
  %v512 = vadd.f32 %v404, %v509
  %s513 = scalar_lea.vmem %s3, 768
  %v514 = vld [vmem:[%s513] sm:$0xff]
  %v515 = vld [vmem:[%s513 + $0x8] sm:$0xff]
  %v516 = vld [vmem:[%s513 + $0x10] sm:$0xff]
  %v517 = vld [vmem:[%s513 + $0x18] sm:$0xff]
  %v518 = vld [vmem:[%s513 + $0x20] sm:$0xff]
  %v519 = vld [vmem:[%s513 + $0x28] sm:$0xff]
  %v520 = vld [vmem:[%s513 + $0x30] sm:$0xff]
  %v521 = vld [vmem:[%s513 + $0x38] sm:$0xff]
  %v522 = vld [vmem:[%s513 + $0x40] sm:$0xff]
  %v523 = vld [vmem:[%s513 + $0x48] sm:$0xff]
  %v524 = vld [vmem:[%s513 + $0x50] sm:$0xff]
  %v525 = vld [vmem:[%s513 + $0x58] sm:$0xff]
  %v526 = vld [vmem:[%s513 + $0x60] sm:$0xff]
  %v527 = vld [vmem:[%s513 + $0x68] sm:$0xff]
  %v528 = vld [vmem:[%s513 + $0x70] sm:$0xff]
  %v529 = vld [vmem:[%s513 + $0x78] sm:$0xff]
  %v530 = vld [vmem:[%s513 + $0x80] sm:$0xff]
  %v531 = vld [vmem:[%s513 + $0x88] sm:$0xff]
  %v532 = vld [vmem:[%s513 + $0x90] sm:$0xff]
  %v533 = vld [vmem:[%s513 + $0x98] sm:$0xff]
  %v534 = vld [vmem:[%s513 + $0xa0] sm:$0xff]
  %v535 = vld [vmem:[%s513 + $0xa8] sm:$0xff]
  %v536 = vld [vmem:[%s513 + $0xb0] sm:$0xff]
  %v537 = vld [vmem:[%s513 + $0xb8] sm:$0xff]
  %v538 = vld [vmem:[%s513 + $0xc0] sm:$0xff]
  %v539 = vld [vmem:[%s513 + $0xc8] sm:$0xff]
  %v540 = vld [vmem:[%s513 + $0xd0] sm:$0xff]
  %v541 = vld [vmem:[%s513 + $0xd8] sm:$0xff]
  %v542 = vld [vmem:[%s513 + $0xe0] sm:$0xff]
  %v543 = vld [vmem:[%s513 + $0xe8] sm:$0xff]
  %v544 = vld [vmem:[%s513 + $0xf0] sm:$0xff]
  %v545 = vld [vmem:[%s513 + $0xf8] sm:$0xff]
  %v546 = vrot.slane %v190, 3
  %v547 = vrot.slane %v191, 3
  %550 = vmatprep.subr.mxu0 0.0
  %551 = vmatpush1.msra.mxu0 %v514
  %552 = vmatprep.subr.mxu0 0.0
  %553 = vmatpush1.msra.mxu0 %v515
  %554 = vmatprep.subr.mxu0 0.0
  %555 = vmatpush1.msra.mxu0 %v516
  %556 = vmatprep.subr.mxu0 0.0
  %557 = vmatpush1.msra.mxu0 %v517
  %558 = vmatprep.subr.mxu0 0.0
  %559 = vmatpush1.msra.mxu0 %v518
  %560 = vmatprep.subr.mxu0 0.0
  %561 = vmatpush1.msra.mxu0 %v519
  %562 = vmatprep.subr.mxu0 0.0
  %563 = vmatpush1.msra.mxu0 %v520
  %564 = vmatprep.subr.mxu0 0.0
  %565 = vmatpush1.msra.mxu0 %v521
  %566 = vmatprep.subr.mxu0 0.0
  %567 = vmatpush1.msra.mxu0 %v522
  %568 = vmatprep.subr.mxu0 0.0
  %569 = vmatpush1.msra.mxu0 %v523
  %570 = vmatprep.subr.mxu0 0.0
  %571 = vmatpush1.msra.mxu0 %v524
  %572 = vmatprep.subr.mxu0 0.0
  %573 = vmatpush1.msra.mxu0 %v525
  %574 = vmatprep.subr.mxu0 0.0
  %575 = vmatpush1.msra.mxu0 %v526
  %576 = vmatprep.subr.mxu0 0.0
  %577 = vmatpush1.msra.mxu0 %v527
  %578 = vmatprep.subr.mxu0 0.0
  %579 = vmatpush1.msra.mxu0 %v528
  %580 = vmatprep.subr.mxu0 0.0
  %581 = vmatpush1.msra.mxu0 %v529
  %582 = vmatprep.subr.mxu0 0.0
  %583 = vmatpush1.msra.mxu0 %v530
  %584 = vmatprep.subr.mxu0 0.0
  %585 = vmatpush1.msra.mxu0 %v531
  %586 = vmatprep.subr.mxu0 0.0
  %587 = vmatpush1.msra.mxu0 %v532
  %588 = vmatprep.subr.mxu0 0.0
  %589 = vmatpush1.msra.mxu0 %v533
  %590 = vmatprep.subr.mxu0 0.0
  %591 = vmatpush1.msra.mxu0 %v534
  %592 = vmatprep.subr.mxu0 0.0
  %593 = vmatpush1.msra.mxu0 %v535
  %594 = vmatprep.subr.mxu0 0.0
  %595 = vmatpush1.msra.mxu0 %v536
  %596 = vmatprep.subr.mxu0 0.0
  %597 = vmatpush1.msra.mxu0 %v537
  %598 = vmatprep.subr.mxu0 0.0
  %599 = vmatpush1.msra.mxu0 %v538
  %600 = vmatprep.subr.mxu0 0.0
  %601 = vmatpush1.msra.mxu0 %v539
  %602 = vmatprep.subr.mxu0 0.0
  %603 = vmatpush1.msra.mxu0 %v540
  %604 = vmatprep.subr.mxu0 0.0
  %605 = vmatpush1.msra.mxu0 %v541
  %606 = vmatprep.subr.mxu0 0.0
  %607 = vmatpush1.msra.mxu0 %v542
  %608 = vmatprep.subr.mxu0 0.0
  %609 = vmatpush1.msra.mxu0 %v543
  %610 = vmatprep.subr.mxu0 0.0
  %611 = vmatpush1.msra.mxu0 %v544
  %612 = vmatprep.subr.mxu0 0.0
  %613 = vmatpush1.msra.mxu0 %v545
  %614 = vmatprep.mubr.f32.mxu0 %v547
  %615 = vmatmul.mubr.f32.gmra.mrb[0].mxu0 %v546
  %v616 = vpop.f32.mrb[0].mxu0
  %v617 = vadd.f32 0.0, %v616
  %v618 = vpop.f32.mrb[0].mxu0
  %619 = vdwg.mxu0
  %v620 = vadd.f32 %v512, %v617
  %s621 = scalar_lea.vmem %s3, 1024
  %v622 = vld [vmem:[%s621] sm:$0xff]
  %v623 = vld [vmem:[%s621 + $0x8] sm:$0xff]
  %v624 = vld [vmem:[%s621 + $0x10] sm:$0xff]
  %v625 = vld [vmem:[%s621 + $0x18] sm:$0xff]
  %v626 = vld [vmem:[%s621 + $0x20] sm:$0xff]
  %v627 = vld [vmem:[%s621 + $0x28] sm:$0xff]
  %v628 = vld [vmem:[%s621 + $0x30] sm:$0xff]
  %v629 = vld [vmem:[%s621 + $0x38] sm:$0xff]
  %v630 = vld [vmem:[%s621 + $0x40] sm:$0xff]
  %v631 = vld [vmem:[%s621 + $0x48] sm:$0xff]
  %v632 = vld [vmem:[%s621 + $0x50] sm:$0xff]
  %v633 = vld [vmem:[%s621 + $0x58] sm:$0xff]
  %v634 = vld [vmem:[%s621 + $0x60] sm:$0xff]
  %v635 = vld [vmem:[%s621 + $0x68] sm:$0xff]
  %v636 = vld [vmem:[%s621 + $0x70] sm:$0xff]
  %v637 = vld [vmem:[%s621 + $0x78] sm:$0xff]
  %v638 = vld [vmem:[%s621 + $0x80] sm:$0xff]
  %v639 = vld [vmem:[%s621 + $0x88] sm:$0xff]
  %v640 = vld [vmem:[%s621 + $0x90] sm:$0xff]
  %v641 = vld [vmem:[%s621 + $0x98] sm:$0xff]
  %v642 = vld [vmem:[%s621 + $0xa0] sm:$0xff]
  %v643 = vld [vmem:[%s621 + $0xa8] sm:$0xff]
  %v644 = vld [vmem:[%s621 + $0xb0] sm:$0xff]
  %v645 = vld [vmem:[%s621 + $0xb8] sm:$0xff]
  %v646 = vld [vmem:[%s621 + $0xc0] sm:$0xff]
  %v647 = vld [vmem:[%s621 + $0xc8] sm:$0xff]
  %v648 = vld [vmem:[%s621 + $0xd0] sm:$0xff]
  %v649 = vld [vmem:[%s621 + $0xd8] sm:$0xff]
  %v650 = vld [vmem:[%s621 + $0xe0] sm:$0xff]
  %v651 = vld [vmem:[%s621 + $0xe8] sm:$0xff]
  %v652 = vld [vmem:[%s621 + $0xf0] sm:$0xff]
  %v653 = vld [vmem:[%s621 + $0xf8] sm:$0xff]
  %v654 = vrot.slane %v190, 4
  %v655 = vrot.slane %v191, 4
  %658 = vmatprep.subr.mxu0 0.0
  %659 = vmatpush1.msra.mxu0 %v622
  %660 = vmatprep.subr.mxu0 0.0
  %661 = vmatpush1.msra.mxu0 %v623
  %662 = vmatprep.subr.mxu0 0.0
  %663 = vmatpush1.msra.mxu0 %v624
  %664 = vmatprep.subr.mxu0 0.0
  %665 = vmatpush1.msra.mxu0 %v625
  %666 = vmatprep.subr.mxu0 0.0
  %667 = vmatpush1.msra.mxu0 %v626
  %668 = vmatprep.subr.mxu0 0.0
  %669 = vmatpush1.msra.mxu0 %v627
  %670 = vmatprep.subr.mxu0 0.0
  %671 = vmatpush1.msra.mxu0 %v628
  %672 = vmatprep.subr.mxu0 0.0
  %673 = vmatpush1.msra.mxu0 %v629
  %674 = vmatprep.subr.mxu0 0.0
  %675 = vmatpush1.msra.mxu0 %v630
  %676 = vmatprep.subr.mxu0 0.0
  %677 = vmatpush1.msra.mxu0 %v631
  %678 = vmatprep.subr.mxu0 0.0
  %679 = vmatpush1.msra.mxu0 %v632
  %680 = vmatprep.subr.mxu0 0.0
  %681 = vmatpush1.msra.mxu0 %v633
  %682 = vmatprep.subr.mxu0 0.0
  %683 = vmatpush1.msra.mxu0 %v634
  %684 = vmatprep.subr.mxu0 0.0
  %685 = vmatpush1.msra.mxu0 %v635
  %686 = vmatprep.subr.mxu0 0.0
  %687 = vmatpush1.msra.mxu0 %v636
  %688 = vmatprep.subr.mxu0 0.0
  %689 = vmatpush1.msra.mxu0 %v637
  %690 = vmatprep.subr.mxu0 0.0
  %691 = vmatpush1.msra.mxu0 %v638
  %692 = vmatprep.subr.mxu0 0.0
  %693 = vmatpush1.msra.mxu0 %v639
  %694 = vmatprep.subr.mxu0 0.0
  %695 = vmatpush1.msra.mxu0 %v640
  %696 = vmatprep.subr.mxu0 0.0
  %697 = vmatpush1.msra.mxu0 %v641
  %698 = vmatprep.subr.mxu0 0.0
  %699 = vmatpush1.msra.mxu0 %v642
  %700 = vmatprep.subr.mxu0 0.0
  %701 = vmatpush1.msra.mxu0 %v643
  %702 = vmatprep.subr.mxu0 0.0
  %703 = vmatpush1.msra.mxu0 %v644
  %704 = vmatprep.subr.mxu0 0.0
  %705 = vmatpush1.msra.mxu0 %v645
  %706 = vmatprep.subr.mxu0 0.0
  %707 = vmatpush1.msra.mxu0 %v646
  %708 = vmatprep.subr.mxu0 0.0
  %709 = vmatpush1.msra.mxu0 %v647
  %710 = vmatprep.subr.mxu0 0.0
  %711 = vmatpush1.msra.mxu0 %v648
  %712 = vmatprep.subr.mxu0 0.0
  %713 = vmatpush1.msra.mxu0 %v649
  %714 = vmatprep.subr.mxu0 0.0
  %715 = vmatpush1.msra.mxu0 %v650
  %716 = vmatprep.subr.mxu0 0.0
  %717 = vmatpush1.msra.mxu0 %v651
  %718 = vmatprep.subr.mxu0 0.0
  %719 = vmatpush1.msra.mxu0 %v652
  %720 = vmatprep.subr.mxu0 0.0
  %721 = vmatpush1.msra.mxu0 %v653
  %722 = vmatprep.mubr.f32.mxu0 %v655
  %723 = vmatmul.mubr.f32.gmra.mrb[0].mxu0 %v654
  %v724 = vpop.f32.mrb[0].mxu0
  %v725 = vadd.f32 0.0, %v724
  %v726 = vpop.f32.mrb[0].mxu0
  %727 = vdwg.mxu0
  %v728 = vadd.f32 %v620, %v725
  %s729 = scalar_lea.vmem %s3, 1280
  %v730 = vld [vmem:[%s729] sm:$0xff]
  %v731 = vld [vmem:[%s729 + $0x8] sm:$0xff]
  %v732 = vld [vmem:[%s729 + $0x10] sm:$0xff]
  %v733 = vld [vmem:[%s729 + $0x18] sm:$0xff]
  %v734 = vld [vmem:[%s729 + $0x20] sm:$0xff]
  %v735 = vld [vmem:[%s729 + $0x28] sm:$0xff]
  %v736 = vld [vmem:[%s729 + $0x30] sm:$0xff]
  %v737 = vld [vmem:[%s729 + $0x38] sm:$0xff]
  %v738 = vld [vmem:[%s729 + $0x40] sm:$0xff]
  %v739 = vld [vmem:[%s729 + $0x48] sm:$0xff]
  %v740 = vld [vmem:[%s729 + $0x50] sm:$0xff]
  %v741 = vld [vmem:[%s729 + $0x58] sm:$0xff]
  %v742 = vld [vmem:[%s729 + $0x60] sm:$0xff]
  %v743 = vld [vmem:[%s729 + $0x68] sm:$0xff]
  %v744 = vld [vmem:[%s729 + $0x70] sm:$0xff]
  %v745 = vld [vmem:[%s729 + $0x78] sm:$0xff]
  %v746 = vld [vmem:[%s729 + $0x80] sm:$0xff]
  %v747 = vld [vmem:[%s729 + $0x88] sm:$0xff]
  %v748 = vld [vmem:[%s729 + $0x90] sm:$0xff]
  %v749 = vld [vmem:[%s729 + $0x98] sm:$0xff]
  %v750 = vld [vmem:[%s729 + $0xa0] sm:$0xff]
  %v751 = vld [vmem:[%s729 + $0xa8] sm:$0xff]
  %v752 = vld [vmem:[%s729 + $0xb0] sm:$0xff]
  %v753 = vld [vmem:[%s729 + $0xb8] sm:$0xff]
  %v754 = vld [vmem:[%s729 + $0xc0] sm:$0xff]
  %v755 = vld [vmem:[%s729 + $0xc8] sm:$0xff]
  %v756 = vld [vmem:[%s729 + $0xd0] sm:$0xff]
  %v757 = vld [vmem:[%s729 + $0xd8] sm:$0xff]
  %v758 = vld [vmem:[%s729 + $0xe0] sm:$0xff]
  %v759 = vld [vmem:[%s729 + $0xe8] sm:$0xff]
  %v760 = vld [vmem:[%s729 + $0xf0] sm:$0xff]
  %v761 = vld [vmem:[%s729 + $0xf8] sm:$0xff]
  %v762 = vrot.slane %v190, 5
  %v763 = vrot.slane %v191, 5
  %766 = vmatprep.subr.mxu0 0.0
  %767 = vmatpush1.msra.mxu0 %v730
  %768 = vmatprep.subr.mxu0 0.0
  %769 = vmatpush1.msra.mxu0 %v731
  %770 = vmatprep.subr.mxu0 0.0
  %771 = vmatpush1.msra.mxu0 %v732
  %772 = vmatprep.subr.mxu0 0.0
  %773 = vmatpush1.msra.mxu0 %v733
  %774 = vmatprep.subr.mxu0 0.0
  %775 = vmatpush1.msra.mxu0 %v734
  %776 = vmatprep.subr.mxu0 0.0
  %777 = vmatpush1.msra.mxu0 %v735
  %778 = vmatprep.subr.mxu0 0.0
  %779 = vmatpush1.msra.mxu0 %v736
  %780 = vmatprep.subr.mxu0 0.0
  %781 = vmatpush1.msra.mxu0 %v737
  %782 = vmatprep.subr.mxu0 0.0
  %783 = vmatpush1.msra.mxu0 %v738
  %784 = vmatprep.subr.mxu0 0.0
  %785 = vmatpush1.msra.mxu0 %v739
  %786 = vmatprep.subr.mxu0 0.0
  %787 = vmatpush1.msra.mxu0 %v740
  %788 = vmatprep.subr.mxu0 0.0
  %789 = vmatpush1.msra.mxu0 %v741
  %790 = vmatprep.subr.mxu0 0.0
  %791 = vmatpush1.msra.mxu0 %v742
  %792 = vmatprep.subr.mxu0 0.0
  %793 = vmatpush1.msra.mxu0 %v743
  %794 = vmatprep.subr.mxu0 0.0
  %795 = vmatpush1.msra.mxu0 %v744
  %796 = vmatprep.subr.mxu0 0.0
  %797 = vmatpush1.msra.mxu0 %v745
  %798 = vmatprep.subr.mxu0 0.0
  %799 = vmatpush1.msra.mxu0 %v746
  %800 = vmatprep.subr.mxu0 0.0
  %801 = vmatpush1.msra.mxu0 %v747
  %802 = vmatprep.subr.mxu0 0.0
  %803 = vmatpush1.msra.mxu0 %v748
  %804 = vmatprep.subr.mxu0 0.0
  %805 = vmatpush1.msra.mxu0 %v749
  %806 = vmatprep.subr.mxu0 0.0
  %807 = vmatpush1.msra.mxu0 %v750
  %808 = vmatprep.subr.mxu0 0.0
  %809 = vmatpush1.msra.mxu0 %v751
  %810 = vmatprep.subr.mxu0 0.0
  %811 = vmatpush1.msra.mxu0 %v752
  %812 = vmatprep.subr.mxu0 0.0
  %813 = vmatpush1.msra.mxu0 %v753
  %814 = vmatprep.subr.mxu0 0.0
  %815 = vmatpush1.msra.mxu0 %v754
  %816 = vmatprep.subr.mxu0 0.0
  %817 = vmatpush1.msra.mxu0 %v755
  %818 = vmatprep.subr.mxu0 0.0
  %819 = vmatpush1.msra.mxu0 %v756
  %820 = vmatprep.subr.mxu0 0.0
  %821 = vmatpush1.msra.mxu0 %v757
  %822 = vmatprep.subr.mxu0 0.0
  %823 = vmatpush1.msra.mxu0 %v758
  %824 = vmatprep.subr.mxu0 0.0
  %825 = vmatpush1.msra.mxu0 %v759
  %826 = vmatprep.subr.mxu0 0.0
  %827 = vmatpush1.msra.mxu0 %v760
  %828 = vmatprep.subr.mxu0 0.0
  %829 = vmatpush1.msra.mxu0 %v761
  %830 = vmatprep.mubr.f32.mxu0 %v763
  %831 = vmatmul.mubr.f32.gmra.mrb[0].mxu0 %v762
  %v832 = vpop.f32.mrb[0].mxu0
  %v833 = vadd.f32 0.0, %v832
  %v834 = vpop.f32.mrb[0].mxu0
  %835 = vdwg.mxu0
  %v836 = vadd.f32 %v728, %v833
  %s837 = scalar_lea.vmem %s3, 1536
  %v838 = vld [vmem:[%s837] sm:$0xff]
  %v839 = vld [vmem:[%s837 + $0x8] sm:$0xff]
  %v840 = vld [vmem:[%s837 + $0x10] sm:$0xff]
  %v841 = vld [vmem:[%s837 + $0x18] sm:$0xff]
  %v842 = vld [vmem:[%s837 + $0x20] sm:$0xff]
  %v843 = vld [vmem:[%s837 + $0x28] sm:$0xff]
  %v844 = vld [vmem:[%s837 + $0x30] sm:$0xff]
  %v845 = vld [vmem:[%s837 + $0x38] sm:$0xff]
  %v846 = vld [vmem:[%s837 + $0x40] sm:$0xff]
  %v847 = vld [vmem:[%s837 + $0x48] sm:$0xff]
  %v848 = vld [vmem:[%s837 + $0x50] sm:$0xff]
  %v849 = vld [vmem:[%s837 + $0x58] sm:$0xff]
  %v850 = vld [vmem:[%s837 + $0x60] sm:$0xff]
  %v851 = vld [vmem:[%s837 + $0x68] sm:$0xff]
  %v852 = vld [vmem:[%s837 + $0x70] sm:$0xff]
  %v853 = vld [vmem:[%s837 + $0x78] sm:$0xff]
  %v854 = vld [vmem:[%s837 + $0x80] sm:$0xff]
  %v855 = vld [vmem:[%s837 + $0x88] sm:$0xff]
  %v856 = vld [vmem:[%s837 + $0x90] sm:$0xff]
  %v857 = vld [vmem:[%s837 + $0x98] sm:$0xff]
  %v858 = vld [vmem:[%s837 + $0xa0] sm:$0xff]
  %v859 = vld [vmem:[%s837 + $0xa8] sm:$0xff]
  %v860 = vld [vmem:[%s837 + $0xb0] sm:$0xff]
  %v861 = vld [vmem:[%s837 + $0xb8] sm:$0xff]
  %v862 = vld [vmem:[%s837 + $0xc0] sm:$0xff]
  %v863 = vld [vmem:[%s837 + $0xc8] sm:$0xff]
  %v864 = vld [vmem:[%s837 + $0xd0] sm:$0xff]
  %v865 = vld [vmem:[%s837 + $0xd8] sm:$0xff]
  %v866 = vld [vmem:[%s837 + $0xe0] sm:$0xff]
  %v867 = vld [vmem:[%s837 + $0xe8] sm:$0xff]
  %v868 = vld [vmem:[%s837 + $0xf0] sm:$0xff]
  %v869 = vld [vmem:[%s837 + $0xf8] sm:$0xff]
  %v870 = vrot.slane %v190, 6
  %v871 = vrot.slane %v191, 6
  %874 = vmatprep.subr.mxu0 0.0
  %875 = vmatpush1.msra.mxu0 %v838
  %876 = vmatprep.subr.mxu0 0.0
  %877 = vmatpush1.msra.mxu0 %v839
  %878 = vmatprep.subr.mxu0 0.0
  %879 = vmatpush1.msra.mxu0 %v840
  %880 = vmatprep.subr.mxu0 0.0
  %881 = vmatpush1.msra.mxu0 %v841
  %882 = vmatprep.subr.mxu0 0.0
  %883 = vmatpush1.msra.mxu0 %v842
  %884 = vmatprep.subr.mxu0 0.0
  %885 = vmatpush1.msra.mxu0 %v843
  %886 = vmatprep.subr.mxu0 0.0
  %887 = vmatpush1.msra.mxu0 %v844
  %888 = vmatprep.subr.mxu0 0.0
  %889 = vmatpush1.msra.mxu0 %v845
  %890 = vmatprep.subr.mxu0 0.0
  %891 = vmatpush1.msra.mxu0 %v846
  %892 = vmatprep.subr.mxu0 0.0
  %893 = vmatpush1.msra.mxu0 %v847
  %894 = vmatprep.subr.mxu0 0.0
  %895 = vmatpush1.msra.mxu0 %v848
  %896 = vmatprep.subr.mxu0 0.0
  %897 = vmatpush1.msra.mxu0 %v849
  %898 = vmatprep.subr.mxu0 0.0
  %899 = vmatpush1.msra.mxu0 %v850
  %900 = vmatprep.subr.mxu0 0.0
  %901 = vmatpush1.msra.mxu0 %v851
  %902 = vmatprep.subr.mxu0 0.0
  %903 = vmatpush1.msra.mxu0 %v852
  %904 = vmatprep.subr.mxu0 0.0
  %905 = vmatpush1.msra.mxu0 %v853
  %906 = vmatprep.subr.mxu0 0.0
  %907 = vmatpush1.msra.mxu0 %v854
  %908 = vmatprep.subr.mxu0 0.0
  %909 = vmatpush1.msra.mxu0 %v855
  %910 = vmatprep.subr.mxu0 0.0
  %911 = vmatpush1.msra.mxu0 %v856
  %912 = vmatprep.subr.mxu0 0.0
  %913 = vmatpush1.msra.mxu0 %v857
  %914 = vmatprep.subr.mxu0 0.0
  %915 = vmatpush1.msra.mxu0 %v858
  %916 = vmatprep.subr.mxu0 0.0
  %917 = vmatpush1.msra.mxu0 %v859
  %918 = vmatprep.subr.mxu0 0.0
  %919 = vmatpush1.msra.mxu0 %v860
  %920 = vmatprep.subr.mxu0 0.0
  %921 = vmatpush1.msra.mxu0 %v861
  %922 = vmatprep.subr.mxu0 0.0
  %923 = vmatpush1.msra.mxu0 %v862
  %924 = vmatprep.subr.mxu0 0.0
  %925 = vmatpush1.msra.mxu0 %v863
  %926 = vmatprep.subr.mxu0 0.0
  %927 = vmatpush1.msra.mxu0 %v864
  %928 = vmatprep.subr.mxu0 0.0
  %929 = vmatpush1.msra.mxu0 %v865
  %930 = vmatprep.subr.mxu0 0.0
  %931 = vmatpush1.msra.mxu0 %v866
  %932 = vmatprep.subr.mxu0 0.0
  %933 = vmatpush1.msra.mxu0 %v867
  %934 = vmatprep.subr.mxu0 0.0
  %935 = vmatpush1.msra.mxu0 %v868
  %936 = vmatprep.subr.mxu0 0.0
  %937 = vmatpush1.msra.mxu0 %v869
  %938 = vmatprep.mubr.f32.mxu0 %v871
  %939 = vmatmul.mubr.f32.gmra.mrb[0].mxu0 %v870
  %v940 = vpop.f32.mrb[0].mxu0
  %v941 = vadd.f32 0.0, %v940
  %v942 = vpop.f32.mrb[0].mxu0
  %943 = vdwg.mxu0
  %v944 = vadd.f32 %v836, %v941
  %s945 = scalar_lea.vmem %s3, 1792
  %v946 = vld [vmem:[%s945] sm:$0xff]
  %v947 = vld [vmem:[%s945 + $0x8] sm:$0xff]
  %v948 = vld [vmem:[%s945 + $0x10] sm:$0xff]
  %v949 = vld [vmem:[%s945 + $0x18] sm:$0xff]
  %v950 = vld [vmem:[%s945 + $0x20] sm:$0xff]
  %v951 = vld [vmem:[%s945 + $0x28] sm:$0xff]
  %v952 = vld [vmem:[%s945 + $0x30] sm:$0xff]
  %v953 = vld [vmem:[%s945 + $0x38] sm:$0xff]
  %v954 = vld [vmem:[%s945 + $0x40] sm:$0xff]
  %v955 = vld [vmem:[%s945 + $0x48] sm:$0xff]
  %v956 = vld [vmem:[%s945 + $0x50] sm:$0xff]
  %v957 = vld [vmem:[%s945 + $0x58] sm:$0xff]
  %v958 = vld [vmem:[%s945 + $0x60] sm:$0xff]
  %v959 = vld [vmem:[%s945 + $0x68] sm:$0xff]
  %v960 = vld [vmem:[%s945 + $0x70] sm:$0xff]
  %v961 = vld [vmem:[%s945 + $0x78] sm:$0xff]
  %v962 = vld [vmem:[%s945 + $0x80] sm:$0xff]
  %v963 = vld [vmem:[%s945 + $0x88] sm:$0xff]
  %v964 = vld [vmem:[%s945 + $0x90] sm:$0xff]
  %v965 = vld [vmem:[%s945 + $0x98] sm:$0xff]
  %v966 = vld [vmem:[%s945 + $0xa0] sm:$0xff]
  %v967 = vld [vmem:[%s945 + $0xa8] sm:$0xff]
  %v968 = vld [vmem:[%s945 + $0xb0] sm:$0xff]
  %v969 = vld [vmem:[%s945 + $0xb8] sm:$0xff]
  %v970 = vld [vmem:[%s945 + $0xc0] sm:$0xff]
  %v971 = vld [vmem:[%s945 + $0xc8] sm:$0xff]
  %v972 = vld [vmem:[%s945 + $0xd0] sm:$0xff]
  %v973 = vld [vmem:[%s945 + $0xd8] sm:$0xff]
  %v974 = vld [vmem:[%s945 + $0xe0] sm:$0xff]
  %v975 = vld [vmem:[%s945 + $0xe8] sm:$0xff]
  %v976 = vld [vmem:[%s945 + $0xf0] sm:$0xff]
  %v977 = vld [vmem:[%s945 + $0xf8] sm:$0xff]
  %v978 = vrot.slane %v190, 7
  %v979 = vrot.slane %v191, 7
  %982 = vmatprep.subr.mxu0 0.0
  %983 = vmatpush1.msra.mxu0 %v946
  %984 = vmatprep.subr.mxu0 0.0
  %985 = vmatpush1.msra.mxu0 %v947
  %986 = vmatprep.subr.mxu0 0.0
  %987 = vmatpush1.msra.mxu0 %v948
  %988 = vmatprep.subr.mxu0 0.0
  %989 = vmatpush1.msra.mxu0 %v949
  %990 = vmatprep.subr.mxu0 0.0
  %991 = vmatpush1.msra.mxu0 %v950
  %992 = vmatprep.subr.mxu0 0.0
  %993 = vmatpush1.msra.mxu0 %v951
  %994 = vmatprep.subr.mxu0 0.0
  %995 = vmatpush1.msra.mxu0 %v952
  %996 = vmatprep.subr.mxu0 0.0
  %997 = vmatpush1.msra.mxu0 %v953
  %998 = vmatprep.subr.mxu0 0.0
  %999 = vmatpush1.msra.mxu0 %v954
  %1000 = vmatprep.subr.mxu0 0.0
  %1001 = vmatpush1.msra.mxu0 %v955
  %1002 = vmatprep.subr.mxu0 0.0
  %1003 = vmatpush1.msra.mxu0 %v956
  %1004 = vmatprep.subr.mxu0 0.0
  %1005 = vmatpush1.msra.mxu0 %v957
  %1006 = vmatprep.subr.mxu0 0.0
  %1007 = vmatpush1.msra.mxu0 %v958
  %1008 = vmatprep.subr.mxu0 0.0
  %1009 = vmatpush1.msra.mxu0 %v959
  %1010 = vmatprep.subr.mxu0 0.0
  %1011 = vmatpush1.msra.mxu0 %v960
  %1012 = vmatprep.subr.mxu0 0.0
  %1013 = vmatpush1.msra.mxu0 %v961
  %1014 = vmatprep.subr.mxu0 0.0
  %1015 = vmatpush1.msra.mxu0 %v962
  %1016 = vmatprep.subr.mxu0 0.0
  %1017 = vmatpush1.msra.mxu0 %v963
  %1018 = vmatprep.subr.mxu0 0.0
  %1019 = vmatpush1.msra.mxu0 %v964
  %1020 = vmatprep.subr.mxu0 0.0
  %1021 = vmatpush1.msra.mxu0 %v965
  %1022 = vmatprep.subr.mxu0 0.0
  %1023 = vmatpush1.msra.mxu0 %v966
  %1024 = vmatprep.subr.mxu0 0.0
  %1025 = vmatpush1.msra.mxu0 %v967
  %1026 = vmatprep.subr.mxu0 0.0
  %1027 = vmatpush1.msra.mxu0 %v968
  %1028 = vmatprep.subr.mxu0 0.0
  %1029 = vmatpush1.msra.mxu0 %v969
  %1030 = vmatprep.subr.mxu0 0.0
  %1031 = vmatpush1.msra.mxu0 %v970
  %1032 = vmatprep.subr.mxu0 0.0
  %1033 = vmatpush1.msra.mxu0 %v971
  %1034 = vmatprep.subr.mxu0 0.0
  %1035 = vmatpush1.msra.mxu0 %v972
  %1036 = vmatprep.subr.mxu0 0.0
  %1037 = vmatpush1.msra.mxu0 %v973
  %1038 = vmatprep.subr.mxu0 0.0
  %1039 = vmatpush1.msra.mxu0 %v974
  %1040 = vmatprep.subr.mxu0 0.0
  %1041 = vmatpush1.msra.mxu0 %v975
  %1042 = vmatprep.subr.mxu0 0.0
  %1043 = vmatpush1.msra.mxu0 %v976
  %1044 = vmatprep.subr.mxu0 0.0
  %1045 = vmatpush1.msra.mxu0 %v977
  %1046 = vmatprep.mubr.f32.mxu0 %v979
  %1047 = vmatmul.mubr.f32.gmra.mrb[0].mxu0 %v978
  %v1048 = vpop.f32.mrb[0].mxu0
  %v1049 = vadd.f32 0.0, %v1048
  %v1050 = vpop.f32.mrb[0].mxu0
  %1051 = vdwg.mxu0
  %v1052 = vadd.f32 %v944, %v1049
  %1053 = vst [vmem:[%s8] sm:$0x1] %v1052
  %v1054 = vmax.f32 %v1052, 0.0
  %vm1055 = vcmask 261120
  %v1057 = vsel %vm1055, %v1054, 0
  %1059 = vmatprep.subr.mxu0 0.0
  %1060 = vmatpush1.msra.mxu0 %v38
  %1061 = vmatprep.subr.mxu0 0.0
  %1062 = vmatpush1.msra.mxu0 %v39
  %1063 = vmatprep.subr.mxu0 0.0
  %1064 = vmatpush1.msra.mxu0 %v40
  %1065 = vmatprep.subr.mxu0 0.0
  %1066 = vmatpush1.msra.mxu0 %v41
  %1067 = vmatprep.subr.mxu0 0.0
  %1068 = vmatpush1.msra.mxu0 0.0
  %1069 = vmatprep.subr.mxu0 0.0
  %1070 = vmatpush1.msra.mxu0 0.0
  %1071 = vmatprep.subr.mxu0 0.0
  %1072 = vmatpush1.msra.mxu0 0.0
  %1073 = vmatprep.subr.mxu0 0.0
  %1074 = vmatpush1.msra.mxu0 0.0
  %1075 = vmatprep.subr.mxu0 0.0
  %1076 = vmatpush1.msra.mxu0 0.0
  %1077 = vmatprep.subr.mxu0 0.0
  %1078 = vmatpush1.msra.mxu0 0.0
  %1079 = vmatprep.subr.mxu0 0.0
  %1080 = vmatpush1.msra.mxu0 0.0
  %1081 = vmatprep.subr.mxu0 0.0
  %1082 = vmatpush1.msra.mxu0 0.0
  %1083 = vmatprep.subr.mxu0 0.0
  %1084 = vmatpush1.msra.mxu0 0.0
  %1085 = vmatprep.subr.mxu0 0.0
  %1086 = vmatpush1.msra.mxu0 0.0
  %1087 = vmatprep.subr.mxu0 0.0
  %1088 = vmatpush1.msra.mxu0 0.0
  %1089 = vmatprep.subr.mxu0 0.0
  %1090 = vmatpush1.msra.mxu0 0.0
  %1091 = vmatprep.subr.mxu0 0.0
  %1092 = vmatpush1.msra.mxu0 0.0
  %1093 = vmatprep.subr.mxu0 0.0
  %1094 = vmatpush1.msra.mxu0 0.0
  %1095 = vmatprep.subr.mxu0 0.0
  %1096 = vmatpush1.msra.mxu0 0.0
  %1097 = vmatprep.subr.mxu0 0.0
  %1098 = vmatpush1.msra.mxu0 0.0
  %1099 = vmatprep.subr.mxu0 0.0
  %1100 = vmatpush1.msra.mxu0 0.0
  %1101 = vmatprep.subr.mxu0 0.0
  %1102 = vmatpush1.msra.mxu0 0.0
  %1103 = vmatprep.subr.mxu0 0.0
  %1104 = vmatpush1.msra.mxu0 0.0
  %1105 = vmatprep.subr.mxu0 0.0
  %1106 = vmatpush1.msra.mxu0 0.0
  %1107 = vmatprep.subr.mxu0 0.0
  %1108 = vmatpush1.msra.mxu0 0.0
  %1109 = vmatprep.subr.mxu0 0.0
  %1110 = vmatpush1.msra.mxu0 0.0
  %1111 = vmatprep.subr.mxu0 0.0
  %1112 = vmatpush1.msra.mxu0 0.0
  %1113 = vmatprep.subr.mxu0 0.0
  %1114 = vmatpush1.msra.mxu0 0.0
  %1115 = vmatprep.subr.mxu0 0.0
  %1116 = vmatpush1.msra.mxu0 0.0
  %1117 = vmatprep.subr.mxu0 0.0
  %1118 = vmatpush1.msra.mxu0 0.0
  %1119 = vmatprep.subr.mxu0 0.0
  %1120 = vmatpush1.msra.mxu0 0.0
  %1121 = vmatprep.subr.mxu0 0.0
  %1122 = vmatpush1.msra.mxu0 0.0
  %1123 = vmatprep.mubr.f32.mxu0 0.0
  %1124 = vmatmul.mubr.f32.gmra.mrb[0].mxu0 %v1057
  %v1125 = vpop.f32.mrb[0].mxu0
  %v1126 = vadd.f32 %v42, %v1125
  %v1127 = vpop.f32.mrb[0].mxu0
  %1128 = vdwg.mxu0
  %1129 = vst [vmem:[%s9] sm:$0x1] %v1126
  %s1130 = scalar_lea.vmem %s0, 80
  %v1131 = vld [vmem:[%s1130] sm:$0xff]
  %v1132 = vld [vmem:[%s1130 + $0x8] sm:$0xff]
  %v1133 = vld [vmem:[%s1130 + $0x10] sm:$0xff]
  %v1134 = vld [vmem:[%s1130 + $0x18] sm:$0xff]
  %v1135 = vld [vmem:[%s1130 + $0x20] sm:$0xff]
  %v1136 = vld [vmem:[%s1130 + $0x28] sm:$0xff]
  %v1137 = vld [vmem:[%s1130 + $0x30] sm:$0xff]
  %v1138 = vld [vmem:[%s1130 + $0x38] sm:$0xff]
  %v1139 = vld [vmem:[%s1130 + $0x40] sm:$0xf]
  %v1140 = vld [vmem:[%s1130 + $0x48] sm:$0xf]
  %v1142 = vsel %vm86, %v1139, 0
  %v1145 = vsel %vm86, %v1140, 0
  %1147 = vmatprep.subr.mxu0 %v1132
  %1148 = vmatpush1.msra.mxu0 %v1131
  %1149 = vmatprep.subr.mxu0 %v1134
  %1150 = vmatpush1.msra.mxu0 %v1133
  %1151 = vmatprep.subr.mxu0 %v1136
  %1152 = vmatpush1.msra.mxu0 %v1135
  %1153 = vmatprep.subr.mxu0 %v1138
  %1154 = vmatpush1.msra.mxu0 %v1137
  %1155 = vmatprep.subr.mxu0 %v1145
  %1156 = vmatpush1.msra.mxu0 %v1142
  %1157 = vmatprep.subr.mxu0 0.0
  %1158 = vmatpush1.msra.mxu0 0.0
  %1159 = vmatprep.subr.mxu0 0.0
  %1160 = vmatpush1.msra.mxu0 0.0
  %1161 = vmatprep.subr.mxu0 0.0
  %1162 = vmatpush1.msra.mxu0 0.0
  %1163 = vmatprep.subr.mxu0 0.0
  %1164 = vmatpush1.msra.mxu0 0.0
  %1165 = vmatprep.subr.mxu0 0.0
  %1166 = vmatpush1.msra.mxu0 0.0
  %1167 = vmatprep.subr.mxu0 0.0
  %1168 = vmatpush1.msra.mxu0 0.0
  %1169 = vmatprep.subr.mxu0 0.0
  %1170 = vmatpush1.msra.mxu0 0.0
  %1171 = vmatprep.subr.mxu0 0.0
  %1172 = vmatpush1.msra.mxu0 0.0
  %1173 = vmatprep.subr.mxu0 0.0
  %1174 = vmatpush1.msra.mxu0 0.0
  %1175 = vmatprep.subr.mxu0 0.0
  %1176 = vmatpush1.msra.mxu0 0.0
  %1177 = vmatprep.subr.mxu0 0.0
  %1178 = vmatpush1.msra.mxu0 0.0
  %1179 = vmatprep.subr.mxu0 0.0
  %1180 = vmatpush1.msra.mxu0 0.0
  %1181 = vmatprep.subr.mxu0 0.0
  %1182 = vmatpush1.msra.mxu0 0.0
  %1183 = vmatprep.subr.mxu0 0.0
  %1184 = vmatpush1.msra.mxu0 0.0
  %1185 = vmatprep.subr.mxu0 0.0
  %1186 = vmatpush1.msra.mxu0 0.0
  %1187 = vmatprep.subr.mxu0 0.0
  %1188 = vmatpush1.msra.mxu0 0.0
  %1189 = vmatprep.subr.mxu0 0.0
  %1190 = vmatpush1.msra.mxu0 0.0
  %1191 = vmatprep.subr.mxu0 0.0
  %1192 = vmatpush1.msra.mxu0 0.0
  %1193 = vmatprep.subr.mxu0 0.0
  %1194 = vmatpush1.msra.mxu0 0.0
  %1195 = vmatprep.subr.mxu0 0.0
  %1196 = vmatpush1.msra.mxu0 0.0
  %1197 = vmatprep.subr.mxu0 0.0
  %1198 = vmatpush1.msra.mxu0 0.0
  %1199 = vmatprep.subr.mxu0 0.0
  %1200 = vmatpush1.msra.mxu0 0.0
  %1201 = vmatprep.subr.mxu0 0.0
  %1202 = vmatpush1.msra.mxu0 0.0
  %1203 = vmatprep.subr.mxu0 0.0
  %1204 = vmatpush1.msra.mxu0 0.0
  %1205 = vmatprep.subr.mxu0 0.0
  %1206 = vmatpush1.msra.mxu0 0.0
  %1207 = vmatprep.subr.mxu0 0.0
  %1208 = vmatpush1.msra.mxu0 0.0
  %1209 = vmatprep.subr.mxu0 0.0
  %1210 = vmatpush1.msra.mxu0 0.0
  %1211 = vmatprep.mubr.f32.mxu0 0.0
  %1212 = vmatmul.mubr.f32.gmra.mrb[0].mxu0 %v75
  %v1213 = vpop.f32.mrb[0].mxu0
  %v1214 = vadd.f32 %v56, %v1213
  %v1215 = vpop.f32.mrb[0].mxu0
  %v1216 = vadd.f32 %v56, %v1215
  %1217 = vmatprep.mubr.f32.mxu0 0.0
  %1218 = vmatmul.mubr.f32.gmra.mrb[0].mxu0 %v78
  %v1219 = vpop.f32.mrb[0].mxu0
  %v1220 = vadd.f32 %v61, %v1219
  %v1221 = vpop.f32.mrb[0].mxu0
  %v1222 = vadd.f32 %v61, %v1221
  %1223 = vmatprep.mubr.f32.mxu0 0.0
  %1224 = vmatmul.mubr.f32.gmra.mrb[0].mxu0 %v81
  %v1225 = vpop.f32.mrb[0].mxu0
  %v1226 = vadd.f32 %v66, %v1225
  %v1227 = vpop.f32.mrb[0].mxu0
  %v1228 = vadd.f32 %v66, %v1227
  %1229 = vmatprep.mubr.f32.mxu0 0.0
  %1230 = vmatmul.mubr.f32.gmra.mrb[0].mxu0 %v84
  %v1231 = vpop.f32.mrb[0].mxu0
  %v1232 = vadd.f32 %v71, %v1231
  %v1233 = vpop.f32.mrb[0].mxu0
  %v1234 = vadd.f32 %v71, %v1233
  %1235 = vdwg.mxu0
  %s1236 = scalar_lea.vmem %s7, 64
  %1237 = vst [vmem:[%s1236] sm:$0xff] %v1214
  %1238 = vst [vmem:[%s1236 + $0x8] sm:$0xff] %v1216
  %1239 = vst [vmem:[%s1236 + $0x10] sm:$0xff] %v1220
  %1240 = vst [vmem:[%s1236 + $0x18] sm:$0xff] %v1222
  %1241 = vst [vmem:[%s1236 + $0x20] sm:$0xff] %v1226
  %1242 = vst [vmem:[%s1236 + $0x28] sm:$0xff] %v1228
  %1243 = vst [vmem:[%s1236 + $0x30] sm:$0xff] %v1232
  %1244 = vst [vmem:[%s1236 + $0x38] sm:$0xff] %v1234
  %v1245 = vmax.f32 %v1214, 0.0
  %v1246 = vmax.f32 %v1216, 0.0
  %v1247 = vld [vmem:[%s3] sm:$0xff]
  %v1248 = vld [vmem:[%s3 + $0x8] sm:$0xff]
  %v1249 = vld [vmem:[%s3 + $0x10] sm:$0xff]
  %v1250 = vld [vmem:[%s3 + $0x18] sm:$0xff]
  %v1251 = vld [vmem:[%s3 + $0x20] sm:$0xff]
  %v1252 = vld [vmem:[%s3 + $0x28] sm:$0xff]
  %v1253 = vld [vmem:[%s3 + $0x30] sm:$0xff]
  %v1254 = vld [vmem:[%s3 + $0x38] sm:$0xff]
  %v1255 = vld [vmem:[%s3 + $0x40] sm:$0xff]
  %v1256 = vld [vmem:[%s3 + $0x48] sm:$0xff]
  %v1257 = vld [vmem:[%s3 + $0x50] sm:$0xff]
  %v1258 = vld [vmem:[%s3 + $0x58] sm:$0xff]
  %v1259 = vld [vmem:[%s3 + $0x60] sm:$0xff]
  %v1260 = vld [vmem:[%s3 + $0x68] sm:$0xff]
  %v1261 = vld [vmem:[%s3 + $0x70] sm:$0xff]
  %v1262 = vld [vmem:[%s3 + $0x78] sm:$0xff]
  %v1263 = vld [vmem:[%s3 + $0x80] sm:$0xff]
  %v1264 = vld [vmem:[%s3 + $0x88] sm:$0xff]
  %v1265 = vld [vmem:[%s3 + $0x90] sm:$0xff]
  %v1266 = vld [vmem:[%s3 + $0x98] sm:$0xff]
  %v1267 = vld [vmem:[%s3 + $0xa0] sm:$0xff]
  %v1268 = vld [vmem:[%s3 + $0xa8] sm:$0xff]
  %v1269 = vld [vmem:[%s3 + $0xb0] sm:$0xff]
  %v1270 = vld [vmem:[%s3 + $0xb8] sm:$0xff]
  %v1271 = vld [vmem:[%s3 + $0xc0] sm:$0xff]
  %v1272 = vld [vmem:[%s3 + $0xc8] sm:$0xff]
  %v1273 = vld [vmem:[%s3 + $0xd0] sm:$0xff]
  %v1274 = vld [vmem:[%s3 + $0xd8] sm:$0xff]
  %v1275 = vld [vmem:[%s3 + $0xe0] sm:$0xff]
  %v1276 = vld [vmem:[%s3 + $0xe8] sm:$0xff]
  %v1277 = vld [vmem:[%s3 + $0xf0] sm:$0xff]
  %v1278 = vld [vmem:[%s3 + $0xf8] sm:$0xff]
  %1279 = vmatprep.subr.mxu0 0.0
  %1280 = vmatpush1.msra.mxu0 %v1247
  %1281 = vmatprep.subr.mxu0 0.0
  %1282 = vmatpush1.msra.mxu0 %v1248
  %1283 = vmatprep.subr.mxu0 0.0
  %1284 = vmatpush1.msra.mxu0 %v1249
  %1285 = vmatprep.subr.mxu0 0.0
  %1286 = vmatpush1.msra.mxu0 %v1250
  %1287 = vmatprep.subr.mxu0 0.0
  %1288 = vmatpush1.msra.mxu0 %v1251
  %1289 = vmatprep.subr.mxu0 0.0
  %1290 = vmatpush1.msra.mxu0 %v1252
  %1291 = vmatprep.subr.mxu0 0.0
  %1292 = vmatpush1.msra.mxu0 %v1253
  %1293 = vmatprep.subr.mxu0 0.0
  %1294 = vmatpush1.msra.mxu0 %v1254
  %1295 = vmatprep.subr.mxu0 0.0
  %1296 = vmatpush1.msra.mxu0 %v1255
  %1297 = vmatprep.subr.mxu0 0.0
  %1298 = vmatpush1.msra.mxu0 %v1256
  %1299 = vmatprep.subr.mxu0 0.0
  %1300 = vmatpush1.msra.mxu0 %v1257
  %1301 = vmatprep.subr.mxu0 0.0
  %1302 = vmatpush1.msra.mxu0 %v1258
  %1303 = vmatprep.subr.mxu0 0.0
  %1304 = vmatpush1.msra.mxu0 %v1259
  %1305 = vmatprep.subr.mxu0 0.0
  %1306 = vmatpush1.msra.mxu0 %v1260
  %1307 = vmatprep.subr.mxu0 0.0
  %1308 = vmatpush1.msra.mxu0 %v1261
  %1309 = vmatprep.subr.mxu0 0.0
  %1310 = vmatpush1.msra.mxu0 %v1262
  %1311 = vmatprep.subr.mxu0 0.0
  %1312 = vmatpush1.msra.mxu0 %v1263
  %1313 = vmatprep.subr.mxu0 0.0
  %1314 = vmatpush1.msra.mxu0 %v1264
  %1315 = vmatprep.subr.mxu0 0.0
  %1316 = vmatpush1.msra.mxu0 %v1265
  %1317 = vmatprep.subr.mxu0 0.0
  %1318 = vmatpush1.msra.mxu0 %v1266
  %1319 = vmatprep.subr.mxu0 0.0
  %1320 = vmatpush1.msra.mxu0 %v1267
  %1321 = vmatprep.subr.mxu0 0.0
  %1322 = vmatpush1.msra.mxu0 %v1268
  %1323 = vmatprep.subr.mxu0 0.0
  %1324 = vmatpush1.msra.mxu0 %v1269
  %1325 = vmatprep.subr.mxu0 0.0
  %1326 = vmatpush1.msra.mxu0 %v1270
  %1327 = vmatprep.subr.mxu0 0.0
  %1328 = vmatpush1.msra.mxu0 %v1271
  %1329 = vmatprep.subr.mxu0 0.0
  %1330 = vmatpush1.msra.mxu0 %v1272
  %1331 = vmatprep.subr.mxu0 0.0
  %1332 = vmatpush1.msra.mxu0 %v1273
  %1333 = vmatprep.subr.mxu0 0.0
  %1334 = vmatpush1.msra.mxu0 %v1274
  %1335 = vmatprep.subr.mxu0 0.0
  %1336 = vmatpush1.msra.mxu0 %v1275
  %1337 = vmatprep.subr.mxu0 0.0
  %1338 = vmatpush1.msra.mxu0 %v1276
  %1339 = vmatprep.subr.mxu0 0.0
  %1340 = vmatpush1.msra.mxu0 %v1277
  %1341 = vmatprep.subr.mxu0 0.0
  %1342 = vmatpush1.msra.mxu0 %v1278
  %1343 = vmatprep.mubr.f32.mxu0 %v1246
  %1344 = vmatmul.mubr.f32.gmra.mrb[0].mxu0 %v1245
  %v1345 = vpop.f32.mrb[0].mxu0
  %v1346 = vadd.f32 0.0, %v1345
  %v1347 = vpop.f32.mrb[0].mxu0
  %1348 = vdwg.mxu0
  %v1349 = vadd.f32 %v37, %v1346
  %v1350 = vld [vmem:[%s295] sm:$0xff]
  %v1351 = vld [vmem:[%s295 + $0x8] sm:$0xff]
  %v1352 = vld [vmem:[%s295 + $0x10] sm:$0xff]
  %v1353 = vld [vmem:[%s295 + $0x18] sm:$0xff]
  %v1354 = vld [vmem:[%s295 + $0x20] sm:$0xff]
  %v1355 = vld [vmem:[%s295 + $0x28] sm:$0xff]
  %v1356 = vld [vmem:[%s295 + $0x30] sm:$0xff]
  %v1357 = vld [vmem:[%s295 + $0x38] sm:$0xff]
  %v1358 = vld [vmem:[%s295 + $0x40] sm:$0xff]
  %v1359 = vld [vmem:[%s295 + $0x48] sm:$0xff]
  %v1360 = vld [vmem:[%s295 + $0x50] sm:$0xff]
  %v1361 = vld [vmem:[%s295 + $0x58] sm:$0xff]
  %v1362 = vld [vmem:[%s295 + $0x60] sm:$0xff]
  %v1363 = vld [vmem:[%s295 + $0x68] sm:$0xff]
  %v1364 = vld [vmem:[%s295 + $0x70] sm:$0xff]
  %v1365 = vld [vmem:[%s295 + $0x78] sm:$0xff]
  %v1366 = vld [vmem:[%s295 + $0x80] sm:$0xff]
  %v1367 = vld [vmem:[%s295 + $0x88] sm:$0xff]
  %v1368 = vld [vmem:[%s295 + $0x90] sm:$0xff]
  %v1369 = vld [vmem:[%s295 + $0x98] sm:$0xff]
  %v1370 = vld [vmem:[%s295 + $0xa0] sm:$0xff]
  %v1371 = vld [vmem:[%s295 + $0xa8] sm:$0xff]
  %v1372 = vld [vmem:[%s295 + $0xb0] sm:$0xff]
  %v1373 = vld [vmem:[%s295 + $0xb8] sm:$0xff]
  %v1374 = vld [vmem:[%s295 + $0xc0] sm:$0xff]
  %v1375 = vld [vmem:[%s295 + $0xc8] sm:$0xff]
  %v1376 = vld [vmem:[%s295 + $0xd0] sm:$0xff]
  %v1377 = vld [vmem:[%s295 + $0xd8] sm:$0xff]
  %v1378 = vld [vmem:[%s295 + $0xe0] sm:$0xff]
  %v1379 = vld [vmem:[%s295 + $0xe8] sm:$0xff]
  %v1380 = vld [vmem:[%s295 + $0xf0] sm:$0xff]
  %v1381 = vld [vmem:[%s295 + $0xf8] sm:$0xff]
  %v1384 = vrot.slane %v1245, 1
  %v1385 = vrot.slane %v1246, 1
  %1388 = vmatprep.subr.mxu0 0.0
  %1389 = vmatpush1.msra.mxu0 %v1350
  %1390 = vmatprep.subr.mxu0 0.0
  %1391 = vmatpush1.msra.mxu0 %v1351
  %1392 = vmatprep.subr.mxu0 0.0
  %1393 = vmatpush1.msra.mxu0 %v1352
  %1394 = vmatprep.subr.mxu0 0.0
  %1395 = vmatpush1.msra.mxu0 %v1353
  %1396 = vmatprep.subr.mxu0 0.0
  %1397 = vmatpush1.msra.mxu0 %v1354
  %1398 = vmatprep.subr.mxu0 0.0
  %1399 = vmatpush1.msra.mxu0 %v1355
  %1400 = vmatprep.subr.mxu0 0.0
  %1401 = vmatpush1.msra.mxu0 %v1356
  %1402 = vmatprep.subr.mxu0 0.0
  %1403 = vmatpush1.msra.mxu0 %v1357
  %1404 = vmatprep.subr.mxu0 0.0
  %1405 = vmatpush1.msra.mxu0 %v1358
  %1406 = vmatprep.subr.mxu0 0.0
  %1407 = vmatpush1.msra.mxu0 %v1359
  %1408 = vmatprep.subr.mxu0 0.0
  %1409 = vmatpush1.msra.mxu0 %v1360
  %1410 = vmatprep.subr.mxu0 0.0
  %1411 = vmatpush1.msra.mxu0 %v1361
  %1412 = vmatprep.subr.mxu0 0.0
  %1413 = vmatpush1.msra.mxu0 %v1362
  %1414 = vmatprep.subr.mxu0 0.0
  %1415 = vmatpush1.msra.mxu0 %v1363
  %1416 = vmatprep.subr.mxu0 0.0
  %1417 = vmatpush1.msra.mxu0 %v1364
  %1418 = vmatprep.subr.mxu0 0.0
  %1419 = vmatpush1.msra.mxu0 %v1365
  %1420 = vmatprep.subr.mxu0 0.0
  %1421 = vmatpush1.msra.mxu0 %v1366
  %1422 = vmatprep.subr.mxu0 0.0
  %1423 = vmatpush1.msra.mxu0 %v1367
  %1424 = vmatprep.subr.mxu0 0.0
  %1425 = vmatpush1.msra.mxu0 %v1368
  %1426 = vmatprep.subr.mxu0 0.0
  %1427 = vmatpush1.msra.mxu0 %v1369
  %1428 = vmatprep.subr.mxu0 0.0
  %1429 = vmatpush1.msra.mxu0 %v1370
  %1430 = vmatprep.subr.mxu0 0.0
  %1431 = vmatpush1.msra.mxu0 %v1371
  %1432 = vmatprep.subr.mxu0 0.0
  %1433 = vmatpush1.msra.mxu0 %v1372
  %1434 = vmatprep.subr.mxu0 0.0
  %1435 = vmatpush1.msra.mxu0 %v1373
  %1436 = vmatprep.subr.mxu0 0.0
  %1437 = vmatpush1.msra.mxu0 %v1374
  %1438 = vmatprep.subr.mxu0 0.0
  %1439 = vmatpush1.msra.mxu0 %v1375
  %1440 = vmatprep.subr.mxu0 0.0
  %1441 = vmatpush1.msra.mxu0 %v1376
  %1442 = vmatprep.subr.mxu0 0.0
  %1443 = vmatpush1.msra.mxu0 %v1377
  %1444 = vmatprep.subr.mxu0 0.0
  %1445 = vmatpush1.msra.mxu0 %v1378
  %1446 = vmatprep.subr.mxu0 0.0
  %1447 = vmatpush1.msra.mxu0 %v1379
  %1448 = vmatprep.subr.mxu0 0.0
  %1449 = vmatpush1.msra.mxu0 %v1380
  %1450 = vmatprep.subr.mxu0 0.0
  %1451 = vmatpush1.msra.mxu0 %v1381
  %1452 = vmatprep.mubr.f32.mxu0 %v1385
  %1453 = vmatmul.mubr.f32.gmra.mrb[0].mxu0 %v1384
  %v1454 = vpop.f32.mrb[0].mxu0
  %v1455 = vadd.f32 0.0, %v1454
  %v1456 = vpop.f32.mrb[0].mxu0
  %1457 = vdwg.mxu0
  %v1458 = vadd.f32 %v1349, %v1455
  %v1459 = vld [vmem:[%s405] sm:$0xff]
  %v1460 = vld [vmem:[%s405 + $0x8] sm:$0xff]
  %v1461 = vld [vmem:[%s405 + $0x10] sm:$0xff]
  %v1462 = vld [vmem:[%s405 + $0x18] sm:$0xff]
  %v1463 = vld [vmem:[%s405 + $0x20] sm:$0xff]
  %v1464 = vld [vmem:[%s405 + $0x28] sm:$0xff]
  %v1465 = vld [vmem:[%s405 + $0x30] sm:$0xff]
  %v1466 = vld [vmem:[%s405 + $0x38] sm:$0xff]
  %v1467 = vld [vmem:[%s405 + $0x40] sm:$0xff]
  %v1468 = vld [vmem:[%s405 + $0x48] sm:$0xff]
  %v1469 = vld [vmem:[%s405 + $0x50] sm:$0xff]
  %v1470 = vld [vmem:[%s405 + $0x58] sm:$0xff]
  %v1471 = vld [vmem:[%s405 + $0x60] sm:$0xff]
  %v1472 = vld [vmem:[%s405 + $0x68] sm:$0xff]
  %v1473 = vld [vmem:[%s405 + $0x70] sm:$0xff]
  %v1474 = vld [vmem:[%s405 + $0x78] sm:$0xff]
  %v1475 = vld [vmem:[%s405 + $0x80] sm:$0xff]
  %v1476 = vld [vmem:[%s405 + $0x88] sm:$0xff]
  %v1477 = vld [vmem:[%s405 + $0x90] sm:$0xff]
  %v1478 = vld [vmem:[%s405 + $0x98] sm:$0xff]
  %v1479 = vld [vmem:[%s405 + $0xa0] sm:$0xff]
  %v1480 = vld [vmem:[%s405 + $0xa8] sm:$0xff]
  %v1481 = vld [vmem:[%s405 + $0xb0] sm:$0xff]
  %v1482 = vld [vmem:[%s405 + $0xb8] sm:$0xff]
  %v1483 = vld [vmem:[%s405 + $0xc0] sm:$0xff]
  %v1484 = vld [vmem:[%s405 + $0xc8] sm:$0xff]
  %v1485 = vld [vmem:[%s405 + $0xd0] sm:$0xff]
  %v1486 = vld [vmem:[%s405 + $0xd8] sm:$0xff]
  %v1487 = vld [vmem:[%s405 + $0xe0] sm:$0xff]
  %v1488 = vld [vmem:[%s405 + $0xe8] sm:$0xff]
  %v1489 = vld [vmem:[%s405 + $0xf0] sm:$0xff]
  %v1490 = vld [vmem:[%s405 + $0xf8] sm:$0xff]
  %v1491 = vrot.slane %v1245, 2
  %v1492 = vrot.slane %v1246, 2
  %1495 = vmatprep.subr.mxu0 0.0
  %1496 = vmatpush1.msra.mxu0 %v1459
  %1497 = vmatprep.subr.mxu0 0.0
  %1498 = vmatpush1.msra.mxu0 %v1460
  %1499 = vmatprep.subr.mxu0 0.0
  %1500 = vmatpush1.msra.mxu0 %v1461
  %1501 = vmatprep.subr.mxu0 0.0
  %1502 = vmatpush1.msra.mxu0 %v1462
  %1503 = vmatprep.subr.mxu0 0.0
  %1504 = vmatpush1.msra.mxu0 %v1463
  %1505 = vmatprep.subr.mxu0 0.0
  %1506 = vmatpush1.msra.mxu0 %v1464
  %1507 = vmatprep.subr.mxu0 0.0
  %1508 = vmatpush1.msra.mxu0 %v1465
  %1509 = vmatprep.subr.mxu0 0.0
  %1510 = vmatpush1.msra.mxu0 %v1466
  %1511 = vmatprep.subr.mxu0 0.0
  %1512 = vmatpush1.msra.mxu0 %v1467
  %1513 = vmatprep.subr.mxu0 0.0
  %1514 = vmatpush1.msra.mxu0 %v1468
  %1515 = vmatprep.subr.mxu0 0.0
  %1516 = vmatpush1.msra.mxu0 %v1469
  %1517 = vmatprep.subr.mxu0 0.0
  %1518 = vmatpush1.msra.mxu0 %v1470
  %1519 = vmatprep.subr.mxu0 0.0
  %1520 = vmatpush1.msra.mxu0 %v1471
  %1521 = vmatprep.subr.mxu0 0.0
  %1522 = vmatpush1.msra.mxu0 %v1472
  %1523 = vmatprep.subr.mxu0 0.0
  %1524 = vmatpush1.msra.mxu0 %v1473
  %1525 = vmatprep.subr.mxu0 0.0
  %1526 = vmatpush1.msra.mxu0 %v1474
  %1527 = vmatprep.subr.mxu0 0.0
  %1528 = vmatpush1.msra.mxu0 %v1475
  %1529 = vmatprep.subr.mxu0 0.0
  %1530 = vmatpush1.msra.mxu0 %v1476
  %1531 = vmatprep.subr.mxu0 0.0
  %1532 = vmatpush1.msra.mxu0 %v1477
  %1533 = vmatprep.subr.mxu0 0.0
  %1534 = vmatpush1.msra.mxu0 %v1478
  %1535 = vmatprep.subr.mxu0 0.0
  %1536 = vmatpush1.msra.mxu0 %v1479
  %1537 = vmatprep.subr.mxu0 0.0
  %1538 = vmatpush1.msra.mxu0 %v1480
  %1539 = vmatprep.subr.mxu0 0.0
  %1540 = vmatpush1.msra.mxu0 %v1481
  %1541 = vmatprep.subr.mxu0 0.0
  %1542 = vmatpush1.msra.mxu0 %v1482
  %1543 = vmatprep.subr.mxu0 0.0
  %1544 = vmatpush1.msra.mxu0 %v1483
  %1545 = vmatprep.subr.mxu0 0.0
  %1546 = vmatpush1.msra.mxu0 %v1484
  %1547 = vmatprep.subr.mxu0 0.0
  %1548 = vmatpush1.msra.mxu0 %v1485
  %1549 = vmatprep.subr.mxu0 0.0
  %1550 = vmatpush1.msra.mxu0 %v1486
  %1551 = vmatprep.subr.mxu0 0.0
  %1552 = vmatpush1.msra.mxu0 %v1487
  %1553 = vmatprep.subr.mxu0 0.0
  %1554 = vmatpush1.msra.mxu0 %v1488
  %1555 = vmatprep.subr.mxu0 0.0
  %1556 = vmatpush1.msra.mxu0 %v1489
  %1557 = vmatprep.subr.mxu0 0.0
  %1558 = vmatpush1.msra.mxu0 %v1490
  %1559 = vmatprep.mubr.f32.mxu0 %v1492
  %1560 = vmatmul.mubr.f32.gmra.mrb[0].mxu0 %v1491
  %v1561 = vpop.f32.mrb[0].mxu0
  %v1562 = vadd.f32 0.0, %v1561
  %v1563 = vpop.f32.mrb[0].mxu0
  %1564 = vdwg.mxu0
  %v1565 = vadd.f32 %v1458, %v1562
  %v1566 = vld [vmem:[%s513] sm:$0xff]
  %v1567 = vld [vmem:[%s513 + $0x8] sm:$0xff]
  %v1568 = vld [vmem:[%s513 + $0x10] sm:$0xff]
  %v1569 = vld [vmem:[%s513 + $0x18] sm:$0xff]
  %v1570 = vld [vmem:[%s513 + $0x20] sm:$0xff]
  %v1571 = vld [vmem:[%s513 + $0x28] sm:$0xff]
  %v1572 = vld [vmem:[%s513 + $0x30] sm:$0xff]
  %v1573 = vld [vmem:[%s513 + $0x38] sm:$0xff]
  %v1574 = vld [vmem:[%s513 + $0x40] sm:$0xff]
  %v1575 = vld [vmem:[%s513 + $0x48] sm:$0xff]
  %v1576 = vld [vmem:[%s513 + $0x50] sm:$0xff]
  %v1577 = vld [vmem:[%s513 + $0x58] sm:$0xff]
  %v1578 = vld [vmem:[%s513 + $0x60] sm:$0xff]
  %v1579 = vld [vmem:[%s513 + $0x68] sm:$0xff]
  %v1580 = vld [vmem:[%s513 + $0x70] sm:$0xff]
  %v1581 = vld [vmem:[%s513 + $0x78] sm:$0xff]
  %v1582 = vld [vmem:[%s513 + $0x80] sm:$0xff]
  %v1583 = vld [vmem:[%s513 + $0x88] sm:$0xff]
  %v1584 = vld [vmem:[%s513 + $0x90] sm:$0xff]
  %v1585 = vld [vmem:[%s513 + $0x98] sm:$0xff]
  %v1586 = vld [vmem:[%s513 + $0xa0] sm:$0xff]
  %v1587 = vld [vmem:[%s513 + $0xa8] sm:$0xff]
  %v1588 = vld [vmem:[%s513 + $0xb0] sm:$0xff]
  %v1589 = vld [vmem:[%s513 + $0xb8] sm:$0xff]
  %v1590 = vld [vmem:[%s513 + $0xc0] sm:$0xff]
  %v1591 = vld [vmem:[%s513 + $0xc8] sm:$0xff]
  %v1592 = vld [vmem:[%s513 + $0xd0] sm:$0xff]
  %v1593 = vld [vmem:[%s513 + $0xd8] sm:$0xff]
  %v1594 = vld [vmem:[%s513 + $0xe0] sm:$0xff]
  %v1595 = vld [vmem:[%s513 + $0xe8] sm:$0xff]
  %v1596 = vld [vmem:[%s513 + $0xf0] sm:$0xff]
  %v1597 = vld [vmem:[%s513 + $0xf8] sm:$0xff]
  %v1598 = vrot.slane %v1245, 3
  %v1599 = vrot.slane %v1246, 3
  %1602 = vmatprep.subr.mxu0 0.0
  %1603 = vmatpush1.msra.mxu0 %v1566
  %1604 = vmatprep.subr.mxu0 0.0
  %1605 = vmatpush1.msra.mxu0 %v1567
  %1606 = vmatprep.subr.mxu0 0.0
  %1607 = vmatpush1.msra.mxu0 %v1568
  %1608 = vmatprep.subr.mxu0 0.0
  %1609 = vmatpush1.msra.mxu0 %v1569
  %1610 = vmatprep.subr.mxu0 0.0
  %1611 = vmatpush1.msra.mxu0 %v1570
  %1612 = vmatprep.subr.mxu0 0.0
  %1613 = vmatpush1.msra.mxu0 %v1571
  %1614 = vmatprep.subr.mxu0 0.0
  %1615 = vmatpush1.msra.mxu0 %v1572
  %1616 = vmatprep.subr.mxu0 0.0
  %1617 = vmatpush1.msra.mxu0 %v1573
  %1618 = vmatprep.subr.mxu0 0.0
  %1619 = vmatpush1.msra.mxu0 %v1574
  %1620 = vmatprep.subr.mxu0 0.0
  %1621 = vmatpush1.msra.mxu0 %v1575
  %1622 = vmatprep.subr.mxu0 0.0
  %1623 = vmatpush1.msra.mxu0 %v1576
  %1624 = vmatprep.subr.mxu0 0.0
  %1625 = vmatpush1.msra.mxu0 %v1577
  %1626 = vmatprep.subr.mxu0 0.0
  %1627 = vmatpush1.msra.mxu0 %v1578
  %1628 = vmatprep.subr.mxu0 0.0
  %1629 = vmatpush1.msra.mxu0 %v1579
  %1630 = vmatprep.subr.mxu0 0.0
  %1631 = vmatpush1.msra.mxu0 %v1580
  %1632 = vmatprep.subr.mxu0 0.0
  %1633 = vmatpush1.msra.mxu0 %v1581
  %1634 = vmatprep.subr.mxu0 0.0
  %1635 = vmatpush1.msra.mxu0 %v1582
  %1636 = vmatprep.subr.mxu0 0.0
  %1637 = vmatpush1.msra.mxu0 %v1583
  %1638 = vmatprep.subr.mxu0 0.0
  %1639 = vmatpush1.msra.mxu0 %v1584
  %1640 = vmatprep.subr.mxu0 0.0
  %1641 = vmatpush1.msra.mxu0 %v1585
  %1642 = vmatprep.subr.mxu0 0.0
  %1643 = vmatpush1.msra.mxu0 %v1586
  %1644 = vmatprep.subr.mxu0 0.0
  %1645 = vmatpush1.msra.mxu0 %v1587
  %1646 = vmatprep.subr.mxu0 0.0
  %1647 = vmatpush1.msra.mxu0 %v1588
  %1648 = vmatprep.subr.mxu0 0.0
  %1649 = vmatpush1.msra.mxu0 %v1589
  %1650 = vmatprep.subr.mxu0 0.0
  %1651 = vmatpush1.msra.mxu0 %v1590
  %1652 = vmatprep.subr.mxu0 0.0
  %1653 = vmatpush1.msra.mxu0 %v1591
  %1654 = vmatprep.subr.mxu0 0.0
  %1655 = vmatpush1.msra.mxu0 %v1592
  %1656 = vmatprep.subr.mxu0 0.0
  %1657 = vmatpush1.msra.mxu0 %v1593
  %1658 = vmatprep.subr.mxu0 0.0
  %1659 = vmatpush1.msra.mxu0 %v1594
  %1660 = vmatprep.subr.mxu0 0.0
  %1661 = vmatpush1.msra.mxu0 %v1595
  %1662 = vmatprep.subr.mxu0 0.0
  %1663 = vmatpush1.msra.mxu0 %v1596
  %1664 = vmatprep.subr.mxu0 0.0
  %1665 = vmatpush1.msra.mxu0 %v1597
  %1666 = vmatprep.mubr.f32.mxu0 %v1599
  %1667 = vmatmul.mubr.f32.gmra.mrb[0].mxu0 %v1598
  %v1668 = vpop.f32.mrb[0].mxu0
  %v1669 = vadd.f32 0.0, %v1668
  %v1670 = vpop.f32.mrb[0].mxu0
  %1671 = vdwg.mxu0
  %v1672 = vadd.f32 %v1565, %v1669
  %v1673 = vld [vmem:[%s621] sm:$0xff]
  %v1674 = vld [vmem:[%s621 + $0x8] sm:$0xff]
  %v1675 = vld [vmem:[%s621 + $0x10] sm:$0xff]
  %v1676 = vld [vmem:[%s621 + $0x18] sm:$0xff]
  %v1677 = vld [vmem:[%s621 + $0x20] sm:$0xff]
  %v1678 = vld [vmem:[%s621 + $0x28] sm:$0xff]
  %v1679 = vld [vmem:[%s621 + $0x30] sm:$0xff]
  %v1680 = vld [vmem:[%s621 + $0x38] sm:$0xff]
  %v1681 = vld [vmem:[%s621 + $0x40] sm:$0xff]
  %v1682 = vld [vmem:[%s621 + $0x48] sm:$0xff]
  %v1683 = vld [vmem:[%s621 + $0x50] sm:$0xff]
  %v1684 = vld [vmem:[%s621 + $0x58] sm:$0xff]
  %v1685 = vld [vmem:[%s621 + $0x60] sm:$0xff]
  %v1686 = vld [vmem:[%s621 + $0x68] sm:$0xff]
  %v1687 = vld [vmem:[%s621 + $0x70] sm:$0xff]
  %v1688 = vld [vmem:[%s621 + $0x78] sm:$0xff]
  %v1689 = vld [vmem:[%s621 + $0x80] sm:$0xff]
  %v1690 = vld [vmem:[%s621 + $0x88] sm:$0xff]
  %v1691 = vld [vmem:[%s621 + $0x90] sm:$0xff]
  %v1692 = vld [vmem:[%s621 + $0x98] sm:$0xff]
  %v1693 = vld [vmem:[%s621 + $0xa0] sm:$0xff]
  %v1694 = vld [vmem:[%s621 + $0xa8] sm:$0xff]
  %v1695 = vld [vmem:[%s621 + $0xb0] sm:$0xff]
  %v1696 = vld [vmem:[%s621 + $0xb8] sm:$0xff]
  %v1697 = vld [vmem:[%s621 + $0xc0] sm:$0xff]
  %v1698 = vld [vmem:[%s621 + $0xc8] sm:$0xff]
  %v1699 = vld [vmem:[%s621 + $0xd0] sm:$0xff]
  %v1700 = vld [vmem:[%s621 + $0xd8] sm:$0xff]
  %v1701 = vld [vmem:[%s621 + $0xe0] sm:$0xff]
  %v1702 = vld [vmem:[%s621 + $0xe8] sm:$0xff]
  %v1703 = vld [vmem:[%s621 + $0xf0] sm:$0xff]
  %v1704 = vld [vmem:[%s621 + $0xf8] sm:$0xff]
  %v1705 = vrot.slane %v1245, 4
  %v1706 = vrot.slane %v1246, 4
  %1709 = vmatprep.subr.mxu0 0.0
  %1710 = vmatpush1.msra.mxu0 %v1673
  %1711 = vmatprep.subr.mxu0 0.0
  %1712 = vmatpush1.msra.mxu0 %v1674
  %1713 = vmatprep.subr.mxu0 0.0
  %1714 = vmatpush1.msra.mxu0 %v1675
  %1715 = vmatprep.subr.mxu0 0.0
  %1716 = vmatpush1.msra.mxu0 %v1676
  %1717 = vmatprep.subr.mxu0 0.0
  %1718 = vmatpush1.msra.mxu0 %v1677
  %1719 = vmatprep.subr.mxu0 0.0
  %1720 = vmatpush1.msra.mxu0 %v1678
  %1721 = vmatprep.subr.mxu0 0.0
  %1722 = vmatpush1.msra.mxu0 %v1679
  %1723 = vmatprep.subr.mxu0 0.0
  %1724 = vmatpush1.msra.mxu0 %v1680
  %1725 = vmatprep.subr.mxu0 0.0
  %1726 = vmatpush1.msra.mxu0 %v1681
  %1727 = vmatprep.subr.mxu0 0.0
  %1728 = vmatpush1.msra.mxu0 %v1682
  %1729 = vmatprep.subr.mxu0 0.0
  %1730 = vmatpush1.msra.mxu0 %v1683
  %1731 = vmatprep.subr.mxu0 0.0
  %1732 = vmatpush1.msra.mxu0 %v1684
  %1733 = vmatprep.subr.mxu0 0.0
  %1734 = vmatpush1.msra.mxu0 %v1685
  %1735 = vmatprep.subr.mxu0 0.0
  %1736 = vmatpush1.msra.mxu0 %v1686
  %1737 = vmatprep.subr.mxu0 0.0
  %1738 = vmatpush1.msra.mxu0 %v1687
  %1739 = vmatprep.subr.mxu0 0.0
  %1740 = vmatpush1.msra.mxu0 %v1688
  %1741 = vmatprep.subr.mxu0 0.0
  %1742 = vmatpush1.msra.mxu0 %v1689
  %1743 = vmatprep.subr.mxu0 0.0
  %1744 = vmatpush1.msra.mxu0 %v1690
  %1745 = vmatprep.subr.mxu0 0.0
  %1746 = vmatpush1.msra.mxu0 %v1691
  %1747 = vmatprep.subr.mxu0 0.0
  %1748 = vmatpush1.msra.mxu0 %v1692
  %1749 = vmatprep.subr.mxu0 0.0
  %1750 = vmatpush1.msra.mxu0 %v1693
  %1751 = vmatprep.subr.mxu0 0.0
  %1752 = vmatpush1.msra.mxu0 %v1694
  %1753 = vmatprep.subr.mxu0 0.0
  %1754 = vmatpush1.msra.mxu0 %v1695
  %1755 = vmatprep.subr.mxu0 0.0
  %1756 = vmatpush1.msra.mxu0 %v1696
  %1757 = vmatprep.subr.mxu0 0.0
  %1758 = vmatpush1.msra.mxu0 %v1697
  %1759 = vmatprep.subr.mxu0 0.0
  %1760 = vmatpush1.msra.mxu0 %v1698
  %1761 = vmatprep.subr.mxu0 0.0
  %1762 = vmatpush1.msra.mxu0 %v1699
  %1763 = vmatprep.subr.mxu0 0.0
  %1764 = vmatpush1.msra.mxu0 %v1700
  %1765 = vmatprep.subr.mxu0 0.0
  %1766 = vmatpush1.msra.mxu0 %v1701
  %1767 = vmatprep.subr.mxu0 0.0
  %1768 = vmatpush1.msra.mxu0 %v1702
  %1769 = vmatprep.subr.mxu0 0.0
  %1770 = vmatpush1.msra.mxu0 %v1703
  %1771 = vmatprep.subr.mxu0 0.0
  %1772 = vmatpush1.msra.mxu0 %v1704
  %1773 = vmatprep.mubr.f32.mxu0 %v1706
  %1774 = vmatmul.mubr.f32.gmra.mrb[0].mxu0 %v1705
  %v1775 = vpop.f32.mrb[0].mxu0
  %v1776 = vadd.f32 0.0, %v1775
  %v1777 = vpop.f32.mrb[0].mxu0
  %1778 = vdwg.mxu0
  %v1779 = vadd.f32 %v1672, %v1776
  %v1780 = vld [vmem:[%s729] sm:$0xff]
  %v1781 = vld [vmem:[%s729 + $0x8] sm:$0xff]
  %v1782 = vld [vmem:[%s729 + $0x10] sm:$0xff]
  %v1783 = vld [vmem:[%s729 + $0x18] sm:$0xff]
  %v1784 = vld [vmem:[%s729 + $0x20] sm:$0xff]
  %v1785 = vld [vmem:[%s729 + $0x28] sm:$0xff]
  %v1786 = vld [vmem:[%s729 + $0x30] sm:$0xff]
  %v1787 = vld [vmem:[%s729 + $0x38] sm:$0xff]
  %v1788 = vld [vmem:[%s729 + $0x40] sm:$0xff]
  %v1789 = vld [vmem:[%s729 + $0x48] sm:$0xff]
  %v1790 = vld [vmem:[%s729 + $0x50] sm:$0xff]
  %v1791 = vld [vmem:[%s729 + $0x58] sm:$0xff]
  %v1792 = vld [vmem:[%s729 + $0x60] sm:$0xff]
  %v1793 = vld [vmem:[%s729 + $0x68] sm:$0xff]
  %v1794 = vld [vmem:[%s729 + $0x70] sm:$0xff]
  %v1795 = vld [vmem:[%s729 + $0x78] sm:$0xff]
  %v1796 = vld [vmem:[%s729 + $0x80] sm:$0xff]
  %v1797 = vld [vmem:[%s729 + $0x88] sm:$0xff]
  %v1798 = vld [vmem:[%s729 + $0x90] sm:$0xff]
  %v1799 = vld [vmem:[%s729 + $0x98] sm:$0xff]
  %v1800 = vld [vmem:[%s729 + $0xa0] sm:$0xff]
  %v1801 = vld [vmem:[%s729 + $0xa8] sm:$0xff]
  %v1802 = vld [vmem:[%s729 + $0xb0] sm:$0xff]
  %v1803 = vld [vmem:[%s729 + $0xb8] sm:$0xff]
  %v1804 = vld [vmem:[%s729 + $0xc0] sm:$0xff]
  %v1805 = vld [vmem:[%s729 + $0xc8] sm:$0xff]
  %v1806 = vld [vmem:[%s729 + $0xd0] sm:$0xff]
  %v1807 = vld [vmem:[%s729 + $0xd8] sm:$0xff]
  %v1808 = vld [vmem:[%s729 + $0xe0] sm:$0xff]
  %v1809 = vld [vmem:[%s729 + $0xe8] sm:$0xff]
  %v1810 = vld [vmem:[%s729 + $0xf0] sm:$0xff]
  %v1811 = vld [vmem:[%s729 + $0xf8] sm:$0xff]
  %v1812 = vrot.slane %v1245, 5
  %v1813 = vrot.slane %v1246, 5
  %1816 = vmatprep.subr.mxu0 0.0
  %1817 = vmatpush1.msra.mxu0 %v1780
  %1818 = vmatprep.subr.mxu0 0.0
  %1819 = vmatpush1.msra.mxu0 %v1781
  %1820 = vmatprep.subr.mxu0 0.0
  %1821 = vmatpush1.msra.mxu0 %v1782
  %1822 = vmatprep.subr.mxu0 0.0
  %1823 = vmatpush1.msra.mxu0 %v1783
  %1824 = vmatprep.subr.mxu0 0.0
  %1825 = vmatpush1.msra.mxu0 %v1784
  %1826 = vmatprep.subr.mxu0 0.0
  %1827 = vmatpush1.msra.mxu0 %v1785
  %1828 = vmatprep.subr.mxu0 0.0
  %1829 = vmatpush1.msra.mxu0 %v1786
  %1830 = vmatprep.subr.mxu0 0.0
  %1831 = vmatpush1.msra.mxu0 %v1787
  %1832 = vmatprep.subr.mxu0 0.0
  %1833 = vmatpush1.msra.mxu0 %v1788
  %1834 = vmatprep.subr.mxu0 0.0
  %1835 = vmatpush1.msra.mxu0 %v1789
  %1836 = vmatprep.subr.mxu0 0.0
  %1837 = vmatpush1.msra.mxu0 %v1790
  %1838 = vmatprep.subr.mxu0 0.0
  %1839 = vmatpush1.msra.mxu0 %v1791
  %1840 = vmatprep.subr.mxu0 0.0
  %1841 = vmatpush1.msra.mxu0 %v1792
  %1842 = vmatprep.subr.mxu0 0.0
  %1843 = vmatpush1.msra.mxu0 %v1793
  %1844 = vmatprep.subr.mxu0 0.0
  %1845 = vmatpush1.msra.mxu0 %v1794
  %1846 = vmatprep.subr.mxu0 0.0
  %1847 = vmatpush1.msra.mxu0 %v1795
  %1848 = vmatprep.subr.mxu0 0.0
  %1849 = vmatpush1.msra.mxu0 %v1796
  %1850 = vmatprep.subr.mxu0 0.0
  %1851 = vmatpush1.msra.mxu0 %v1797
  %1852 = vmatprep.subr.mxu0 0.0
  %1853 = vmatpush1.msra.mxu0 %v1798
  %1854 = vmatprep.subr.mxu0 0.0
  %1855 = vmatpush1.msra.mxu0 %v1799
  %1856 = vmatprep.subr.mxu0 0.0
  %1857 = vmatpush1.msra.mxu0 %v1800
  %1858 = vmatprep.subr.mxu0 0.0
  %1859 = vmatpush1.msra.mxu0 %v1801
  %1860 = vmatprep.subr.mxu0 0.0
  %1861 = vmatpush1.msra.mxu0 %v1802
  %1862 = vmatprep.subr.mxu0 0.0
  %1863 = vmatpush1.msra.mxu0 %v1803
  %1864 = vmatprep.subr.mxu0 0.0
  %1865 = vmatpush1.msra.mxu0 %v1804
  %1866 = vmatprep.subr.mxu0 0.0
  %1867 = vmatpush1.msra.mxu0 %v1805
  %1868 = vmatprep.subr.mxu0 0.0
  %1869 = vmatpush1.msra.mxu0 %v1806
  %1870 = vmatprep.subr.mxu0 0.0
  %1871 = vmatpush1.msra.mxu0 %v1807
  %1872 = vmatprep.subr.mxu0 0.0
  %1873 = vmatpush1.msra.mxu0 %v1808
  %1874 = vmatprep.subr.mxu0 0.0
  %1875 = vmatpush1.msra.mxu0 %v1809
  %1876 = vmatprep.subr.mxu0 0.0
  %1877 = vmatpush1.msra.mxu0 %v1810
  %1878 = vmatprep.subr.mxu0 0.0
  %1879 = vmatpush1.msra.mxu0 %v1811
  %1880 = vmatprep.mubr.f32.mxu0 %v1813
  %1881 = vmatmul.mubr.f32.gmra.mrb[0].mxu0 %v1812
  %v1882 = vpop.f32.mrb[0].mxu0
  %v1883 = vadd.f32 0.0, %v1882
  %v1884 = vpop.f32.mrb[0].mxu0
  %1885 = vdwg.mxu0
  %v1886 = vadd.f32 %v1779, %v1883
  %v1887 = vld [vmem:[%s837] sm:$0xff]
  %v1888 = vld [vmem:[%s837 + $0x8] sm:$0xff]
  %v1889 = vld [vmem:[%s837 + $0x10] sm:$0xff]
  %v1890 = vld [vmem:[%s837 + $0x18] sm:$0xff]
  %v1891 = vld [vmem:[%s837 + $0x20] sm:$0xff]
  %v1892 = vld [vmem:[%s837 + $0x28] sm:$0xff]
  %v1893 = vld [vmem:[%s837 + $0x30] sm:$0xff]
  %v1894 = vld [vmem:[%s837 + $0x38] sm:$0xff]
  %v1895 = vld [vmem:[%s837 + $0x40] sm:$0xff]
  %v1896 = vld [vmem:[%s837 + $0x48] sm:$0xff]
  %v1897 = vld [vmem:[%s837 + $0x50] sm:$0xff]
  %v1898 = vld [vmem:[%s837 + $0x58] sm:$0xff]
  %v1899 = vld [vmem:[%s837 + $0x60] sm:$0xff]
  %v1900 = vld [vmem:[%s837 + $0x68] sm:$0xff]
  %v1901 = vld [vmem:[%s837 + $0x70] sm:$0xff]
  %v1902 = vld [vmem:[%s837 + $0x78] sm:$0xff]
  %v1903 = vld [vmem:[%s837 + $0x80] sm:$0xff]
  %v1904 = vld [vmem:[%s837 + $0x88] sm:$0xff]
  %v1905 = vld [vmem:[%s837 + $0x90] sm:$0xff]
  %v1906 = vld [vmem:[%s837 + $0x98] sm:$0xff]
  %v1907 = vld [vmem:[%s837 + $0xa0] sm:$0xff]
  %v1908 = vld [vmem:[%s837 + $0xa8] sm:$0xff]
  %v1909 = vld [vmem:[%s837 + $0xb0] sm:$0xff]
  %v1910 = vld [vmem:[%s837 + $0xb8] sm:$0xff]
  %v1911 = vld [vmem:[%s837 + $0xc0] sm:$0xff]
  %v1912 = vld [vmem:[%s837 + $0xc8] sm:$0xff]
  %v1913 = vld [vmem:[%s837 + $0xd0] sm:$0xff]
  %v1914 = vld [vmem:[%s837 + $0xd8] sm:$0xff]
  %v1915 = vld [vmem:[%s837 + $0xe0] sm:$0xff]
  %v1916 = vld [vmem:[%s837 + $0xe8] sm:$0xff]
  %v1917 = vld [vmem:[%s837 + $0xf0] sm:$0xff]
  %v1918 = vld [vmem:[%s837 + $0xf8] sm:$0xff]
  %v1919 = vrot.slane %v1245, 6
  %v1920 = vrot.slane %v1246, 6
  %1923 = vmatprep.subr.mxu0 0.0
  %1924 = vmatpush1.msra.mxu0 %v1887
  %1925 = vmatprep.subr.mxu0 0.0
  %1926 = vmatpush1.msra.mxu0 %v1888
  %1927 = vmatprep.subr.mxu0 0.0
  %1928 = vmatpush1.msra.mxu0 %v1889
  %1929 = vmatprep.subr.mxu0 0.0
  %1930 = vmatpush1.msra.mxu0 %v1890
  %1931 = vmatprep.subr.mxu0 0.0
  %1932 = vmatpush1.msra.mxu0 %v1891
  %1933 = vmatprep.subr.mxu0 0.0
  %1934 = vmatpush1.msra.mxu0 %v1892
  %1935 = vmatprep.subr.mxu0 0.0
  %1936 = vmatpush1.msra.mxu0 %v1893
  %1937 = vmatprep.subr.mxu0 0.0
  %1938 = vmatpush1.msra.mxu0 %v1894
  %1939 = vmatprep.subr.mxu0 0.0
  %1940 = vmatpush1.msra.mxu0 %v1895
  %1941 = vmatprep.subr.mxu0 0.0
  %1942 = vmatpush1.msra.mxu0 %v1896
  %1943 = vmatprep.subr.mxu0 0.0
  %1944 = vmatpush1.msra.mxu0 %v1897
  %1945 = vmatprep.subr.mxu0 0.0
  %1946 = vmatpush1.msra.mxu0 %v1898
  %1947 = vmatprep.subr.mxu0 0.0
  %1948 = vmatpush1.msra.mxu0 %v1899
  %1949 = vmatprep.subr.mxu0 0.0
  %1950 = vmatpush1.msra.mxu0 %v1900
  %1951 = vmatprep.subr.mxu0 0.0
  %1952 = vmatpush1.msra.mxu0 %v1901
  %1953 = vmatprep.subr.mxu0 0.0
  %1954 = vmatpush1.msra.mxu0 %v1902
  %1955 = vmatprep.subr.mxu0 0.0
  %1956 = vmatpush1.msra.mxu0 %v1903
  %1957 = vmatprep.subr.mxu0 0.0
  %1958 = vmatpush1.msra.mxu0 %v1904
  %1959 = vmatprep.subr.mxu0 0.0
  %1960 = vmatpush1.msra.mxu0 %v1905
  %1961 = vmatprep.subr.mxu0 0.0
  %1962 = vmatpush1.msra.mxu0 %v1906
  %1963 = vmatprep.subr.mxu0 0.0
  %1964 = vmatpush1.msra.mxu0 %v1907
  %1965 = vmatprep.subr.mxu0 0.0
  %1966 = vmatpush1.msra.mxu0 %v1908
  %1967 = vmatprep.subr.mxu0 0.0
  %1968 = vmatpush1.msra.mxu0 %v1909
  %1969 = vmatprep.subr.mxu0 0.0
  %1970 = vmatpush1.msra.mxu0 %v1910
  %1971 = vmatprep.subr.mxu0 0.0
  %1972 = vmatpush1.msra.mxu0 %v1911
  %1973 = vmatprep.subr.mxu0 0.0
  %1974 = vmatpush1.msra.mxu0 %v1912
  %1975 = vmatprep.subr.mxu0 0.0
  %1976 = vmatpush1.msra.mxu0 %v1913
  %1977 = vmatprep.subr.mxu0 0.0
  %1978 = vmatpush1.msra.mxu0 %v1914
  %1979 = vmatprep.subr.mxu0 0.0
  %1980 = vmatpush1.msra.mxu0 %v1915
  %1981 = vmatprep.subr.mxu0 0.0
  %1982 = vmatpush1.msra.mxu0 %v1916
  %1983 = vmatprep.subr.mxu0 0.0
  %1984 = vmatpush1.msra.mxu0 %v1917
  %1985 = vmatprep.subr.mxu0 0.0
  %1986 = vmatpush1.msra.mxu0 %v1918
  %1987 = vmatprep.mubr.f32.mxu0 %v1920
  %1988 = vmatmul.mubr.f32.gmra.mrb[0].mxu0 %v1919
  %v1989 = vpop.f32.mrb[0].mxu0
  %v1990 = vadd.f32 0.0, %v1989
  %v1991 = vpop.f32.mrb[0].mxu0
  %1992 = vdwg.mxu0
  %v1993 = vadd.f32 %v1886, %v1990
  %v1994 = vld [vmem:[%s945] sm:$0xff]
  %v1995 = vld [vmem:[%s945 + $0x8] sm:$0xff]
  %v1996 = vld [vmem:[%s945 + $0x10] sm:$0xff]
  %v1997 = vld [vmem:[%s945 + $0x18] sm:$0xff]
  %v1998 = vld [vmem:[%s945 + $0x20] sm:$0xff]
  %v1999 = vld [vmem:[%s945 + $0x28] sm:$0xff]
  %v2000 = vld [vmem:[%s945 + $0x30] sm:$0xff]
  %v2001 = vld [vmem:[%s945 + $0x38] sm:$0xff]
  %v2002 = vld [vmem:[%s945 + $0x40] sm:$0xff]
  %v2003 = vld [vmem:[%s945 + $0x48] sm:$0xff]
  %v2004 = vld [vmem:[%s945 + $0x50] sm:$0xff]
  %v2005 = vld [vmem:[%s945 + $0x58] sm:$0xff]
  %v2006 = vld [vmem:[%s945 + $0x60] sm:$0xff]
  %v2007 = vld [vmem:[%s945 + $0x68] sm:$0xff]
  %v2008 = vld [vmem:[%s945 + $0x70] sm:$0xff]
  %v2009 = vld [vmem:[%s945 + $0x78] sm:$0xff]
  %v2010 = vld [vmem:[%s945 + $0x80] sm:$0xff]
  %v2011 = vld [vmem:[%s945 + $0x88] sm:$0xff]
  %v2012 = vld [vmem:[%s945 + $0x90] sm:$0xff]
  %v2013 = vld [vmem:[%s945 + $0x98] sm:$0xff]
  %v2014 = vld [vmem:[%s945 + $0xa0] sm:$0xff]
  %v2015 = vld [vmem:[%s945 + $0xa8] sm:$0xff]
  %v2016 = vld [vmem:[%s945 + $0xb0] sm:$0xff]
  %v2017 = vld [vmem:[%s945 + $0xb8] sm:$0xff]
  %v2018 = vld [vmem:[%s945 + $0xc0] sm:$0xff]
  %v2019 = vld [vmem:[%s945 + $0xc8] sm:$0xff]
  %v2020 = vld [vmem:[%s945 + $0xd0] sm:$0xff]
  %v2021 = vld [vmem:[%s945 + $0xd8] sm:$0xff]
  %v2022 = vld [vmem:[%s945 + $0xe0] sm:$0xff]
  %v2023 = vld [vmem:[%s945 + $0xe8] sm:$0xff]
  %v2024 = vld [vmem:[%s945 + $0xf0] sm:$0xff]
  %v2025 = vld [vmem:[%s945 + $0xf8] sm:$0xff]
  %v2026 = vrot.slane %v1245, 7
  %v2027 = vrot.slane %v1246, 7
  %2030 = vmatprep.subr.mxu0 0.0
  %2031 = vmatpush1.msra.mxu0 %v1994
  %2032 = vmatprep.subr.mxu0 0.0
  %2033 = vmatpush1.msra.mxu0 %v1995
  %2034 = vmatprep.subr.mxu0 0.0
  %2035 = vmatpush1.msra.mxu0 %v1996
  %2036 = vmatprep.subr.mxu0 0.0
  %2037 = vmatpush1.msra.mxu0 %v1997
  %2038 = vmatprep.subr.mxu0 0.0
  %2039 = vmatpush1.msra.mxu0 %v1998
  %2040 = vmatprep.subr.mxu0 0.0
  %2041 = vmatpush1.msra.mxu0 %v1999
  %2042 = vmatprep.subr.mxu0 0.0
  %2043 = vmatpush1.msra.mxu0 %v2000
  %2044 = vmatprep.subr.mxu0 0.0
  %2045 = vmatpush1.msra.mxu0 %v2001
  %2046 = vmatprep.subr.mxu0 0.0
  %2047 = vmatpush1.msra.mxu0 %v2002
  %2048 = vmatprep.subr.mxu0 0.0
  %2049 = vmatpush1.msra.mxu0 %v2003
  %2050 = vmatprep.subr.mxu0 0.0
  %2051 = vmatpush1.msra.mxu0 %v2004
  %2052 = vmatprep.subr.mxu0 0.0
  %2053 = vmatpush1.msra.mxu0 %v2005
  %2054 = vmatprep.subr.mxu0 0.0
  %2055 = vmatpush1.msra.mxu0 %v2006
  %2056 = vmatprep.subr.mxu0 0.0
  %2057 = vmatpush1.msra.mxu0 %v2007
  %2058 = vmatprep.subr.mxu0 0.0
  %2059 = vmatpush1.msra.mxu0 %v2008
  %2060 = vmatprep.subr.mxu0 0.0
  %2061 = vmatpush1.msra.mxu0 %v2009
  %2062 = vmatprep.subr.mxu0 0.0
  %2063 = vmatpush1.msra.mxu0 %v2010
  %2064 = vmatprep.subr.mxu0 0.0
  %2065 = vmatpush1.msra.mxu0 %v2011
  %2066 = vmatprep.subr.mxu0 0.0
  %2067 = vmatpush1.msra.mxu0 %v2012
  %2068 = vmatprep.subr.mxu0 0.0
  %2069 = vmatpush1.msra.mxu0 %v2013
  %2070 = vmatprep.subr.mxu0 0.0
  %2071 = vmatpush1.msra.mxu0 %v2014
  %2072 = vmatprep.subr.mxu0 0.0
  %2073 = vmatpush1.msra.mxu0 %v2015
  %2074 = vmatprep.subr.mxu0 0.0
  %2075 = vmatpush1.msra.mxu0 %v2016
  %2076 = vmatprep.subr.mxu0 0.0
  %2077 = vmatpush1.msra.mxu0 %v2017
  %2078 = vmatprep.subr.mxu0 0.0
  %2079 = vmatpush1.msra.mxu0 %v2018
  %2080 = vmatprep.subr.mxu0 0.0
  %2081 = vmatpush1.msra.mxu0 %v2019
  %2082 = vmatprep.subr.mxu0 0.0
  %2083 = vmatpush1.msra.mxu0 %v2020
  %2084 = vmatprep.subr.mxu0 0.0
  %2085 = vmatpush1.msra.mxu0 %v2021
  %2086 = vmatprep.subr.mxu0 0.0
  %2087 = vmatpush1.msra.mxu0 %v2022
  %2088 = vmatprep.subr.mxu0 0.0
  %2089 = vmatpush1.msra.mxu0 %v2023
  %2090 = vmatprep.subr.mxu0 0.0
  %2091 = vmatpush1.msra.mxu0 %v2024
  %2092 = vmatprep.subr.mxu0 0.0
  %2093 = vmatpush1.msra.mxu0 %v2025
  %2094 = vmatprep.mubr.f32.mxu0 %v2027
  %2095 = vmatmul.mubr.f32.gmra.mrb[0].mxu0 %v2026
  %v2096 = vpop.f32.mrb[0].mxu0
  %v2097 = vadd.f32 0.0, %v2096
  %v2098 = vpop.f32.mrb[0].mxu0
  %2099 = vdwg.mxu0
  %v2100 = vadd.f32 %v1993, %v2097
  %2101 = vst [vmem:[%s8 + $0x1] sm:$0x1] %v2100
  %v2102 = vmax.f32 %v2100, 0.0
  %v2104 = vsel %vm1055, %v2102, 0
  %2106 = vmatprep.subr.mxu0 0.0
  %2107 = vmatpush1.msra.mxu0 %v38
  %2108 = vmatprep.subr.mxu0 0.0
  %2109 = vmatpush1.msra.mxu0 %v39
  %2110 = vmatprep.subr.mxu0 0.0
  %2111 = vmatpush1.msra.mxu0 %v40
  %2112 = vmatprep.subr.mxu0 0.0
  %2113 = vmatpush1.msra.mxu0 %v41
  %2114 = vmatprep.subr.mxu0 0.0
  %2115 = vmatpush1.msra.mxu0 0.0
  %2116 = vmatprep.subr.mxu0 0.0
  %2117 = vmatpush1.msra.mxu0 0.0
  %2118 = vmatprep.subr.mxu0 0.0
  %2119 = vmatpush1.msra.mxu0 0.0
  %2120 = vmatprep.subr.mxu0 0.0
  %2121 = vmatpush1.msra.mxu0 0.0
  %2122 = vmatprep.subr.mxu0 0.0
  %2123 = vmatpush1.msra.mxu0 0.0
  %2124 = vmatprep.subr.mxu0 0.0
  %2125 = vmatpush1.msra.mxu0 0.0
  %2126 = vmatprep.subr.mxu0 0.0
  %2127 = vmatpush1.msra.mxu0 0.0
  %2128 = vmatprep.subr.mxu0 0.0
  %2129 = vmatpush1.msra.mxu0 0.0
  %2130 = vmatprep.subr.mxu0 0.0
  %2131 = vmatpush1.msra.mxu0 0.0
  %2132 = vmatprep.subr.mxu0 0.0
  %2133 = vmatpush1.msra.mxu0 0.0
  %2134 = vmatprep.subr.mxu0 0.0
  %2135 = vmatpush1.msra.mxu0 0.0
  %2136 = vmatprep.subr.mxu0 0.0
  %2137 = vmatpush1.msra.mxu0 0.0
  %2138 = vmatprep.subr.mxu0 0.0
  %2139 = vmatpush1.msra.mxu0 0.0
  %2140 = vmatprep.subr.mxu0 0.0
  %2141 = vmatpush1.msra.mxu0 0.0
  %2142 = vmatprep.subr.mxu0 0.0
  %2143 = vmatpush1.msra.mxu0 0.0
  %2144 = vmatprep.subr.mxu0 0.0
  %2145 = vmatpush1.msra.mxu0 0.0
  %2146 = vmatprep.subr.mxu0 0.0
  %2147 = vmatpush1.msra.mxu0 0.0
  %2148 = vmatprep.subr.mxu0 0.0
  %2149 = vmatpush1.msra.mxu0 0.0
  %2150 = vmatprep.subr.mxu0 0.0
  %2151 = vmatpush1.msra.mxu0 0.0
  %2152 = vmatprep.subr.mxu0 0.0
  %2153 = vmatpush1.msra.mxu0 0.0
  %2154 = vmatprep.subr.mxu0 0.0
  %2155 = vmatpush1.msra.mxu0 0.0
  %2156 = vmatprep.subr.mxu0 0.0
  %2157 = vmatpush1.msra.mxu0 0.0
  %2158 = vmatprep.subr.mxu0 0.0
  %2159 = vmatpush1.msra.mxu0 0.0
  %2160 = vmatprep.subr.mxu0 0.0
  %2161 = vmatpush1.msra.mxu0 0.0
  %2162 = vmatprep.subr.mxu0 0.0
  %2163 = vmatpush1.msra.mxu0 0.0
  %2164 = vmatprep.subr.mxu0 0.0
  %2165 = vmatpush1.msra.mxu0 0.0
  %2166 = vmatprep.subr.mxu0 0.0
  %2167 = vmatpush1.msra.mxu0 0.0
  %2168 = vmatprep.subr.mxu0 0.0
  %2169 = vmatpush1.msra.mxu0 0.0
  %2170 = vmatprep.mubr.f32.mxu0 0.0
  %2171 = vmatmul.mubr.f32.gmra.mrb[0].mxu0 %v2104
  %v2172 = vpop.f32.mrb[0].mxu0
  %v2173 = vadd.f32 %v42, %v2172
  %v2174 = vpop.f32.mrb[0].mxu0
  %2175 = vdwg.mxu0
  %2176 = vst [vmem:[%s9 + $0x1] sm:$0x1] %v2173
  // Predicated region
  $region30: #{sequential_wrapper_forward.1} parent=0 // pred_check
    _
  $region31: #{sequential_wrapper_forward.1} parent=0 // pred_check_branch
    %2178 = sbr.rel (0) target = $region33
  $region32: #{sequential_wrapper_forward.1} parent=0 // pred_region
    _
  $region33: #{sequential_wrapper_forward.1} parent=0 // pred_fallthru
    _
  // Predicated region
  $region34: #{sequential_wrapper_forward.1} parent=0 // pred_check
    _
  $region35: #{sequential_wrapper_forward.1} parent=0 // pred_check_branch
    %2180 = sbr.rel (0) target = $region37
  $region36: #{sequential_wrapper_forward.1} parent=0 // pred_region
    _
  $region37: #{sequential_wrapper_forward.1} parent=0 // pred_fallthru
    _
  // Predicated region
  $region38: #{sequential_wrapper_forward.1} parent=0 // pred_check
    _
  $region39: #{sequential_wrapper_forward.1} parent=0 // pred_check_branch
    %2182 = sbr.rel (0) target = $region41
  $region40: #{sequential_wrapper_forward.1} parent=0 // pred_region
    _
  $region41: #{sequential_wrapper_forward.1} parent=0 // pred_fallthru
    _
  // Predicated region
  $region42: #{sequential_wrapper_forward.1} parent=0 // pred_check
    _
  $region43: #{sequential_wrapper_forward.1} parent=0 // pred_check_branch
    %2184 = sbr.rel (0) target = $region45
  $region44: #{sequential_wrapper_forward.1} parent=0 // pred_region
    _
  $region45: #{sequential_wrapper_forward.1} parent=0 // pred_fallthru
    _
  // Predicated region
  $region46: #{sequential_wrapper_forward.1} parent=0 // pred_check
    _
  $region47: #{sequential_wrapper_forward.1} parent=0 // pred_check_branch
    %2186 = sbr.rel (0) target = $region49
  $region48: #{sequential_wrapper_forward.1} parent=0 // pred_region
    _
  $region49: #{sequential_wrapper_forward.1} parent=0 // pred_fallthru
    _
  // Predicated region
  $region50: #{sequential_wrapper_forward.1} parent=0 // pred_check
    _
  $region51: #{sequential_wrapper_forward.1} parent=0 // pred_check_branch
    %2188 = sbr.rel (0) target = $region53
  $region52: #{sequential_wrapper_forward.1} parent=0 // pred_region
    _
  $region53: #{sequential_wrapper_forward.1} parent=0 // pred_fallthru
    _

</llo_original>
